<compile_context>
chip_gen: v5e
topology: v5e:2x2
jax: 0.10.0
libtpu: 0.0.40
codegen_flags: <defaults>
</compile_context>

<pallas_src>
import functools

import jax
import jax.numpy as jnp
from jax import lax
from jax.experimental import pallas as pl
from jax.experimental.pallas import tpu as pltpu


def _round_up(x, m):
    return (x + m - 1) // m * m


def _make_gru_kernel(T, Tc, mask_tail):
    """Build the fused GRU kernel for a chunked grid.

    Kernel refs:
      x_ref   : (Tc*Bp, E)  this chunk's time-major embedded inputs
      wih_ref : (E, G)      fused input->hidden weights, gate order r|z|n,
                            each gate padded to its own 128-lane block
      whh_ref : (Hp, G)     fused hidden->hidden weights (same gate blocking)
      bin_ref : (1, G)      combined bias: b_ih + [b_hh_r, b_hh_z, 0]
      bhn_ref : (1, Hp)     n-gate hidden bias (multiplied by r)
      h_ref   : (Bp, Hp)    hidden state, resident across grid steps (carry)
      xp_ref  : (Tc*Bp, G)  VMEM scratch: this chunk's input projections
    """

    def kernel(x_ref, wih_ref, whh_ref, bin_ref, bhn_ref, h_ref, xp_ref):
        c = pl.program_id(0)
        Bp, Hp = h_ref.shape

        # Phase 1: one time-parallel MXU matmul for every step in this chunk,
        # with the fused (input + r/z hidden) bias folded in.
        xp_ref[...] = (
            jnp.dot(x_ref[...], wih_ref[...], preferred_element_type=jnp.float32)
            + bin_ref[...]
        )

        # Initialize the resident hidden-state carry on the first chunk.
        @pl.when(c == 0)
        def _():
            h_ref[...] = jnp.zeros_like(h_ref)

        # Loop invariants hoisted once: weights resident in vregs, and the
        # n-gate hidden bias broadcast done a single time (not per step).
        w_hh = whh_ref[...]
        b_hn_b = jnp.broadcast_to(bhn_ref[...], (Bp, Hp))

        def step(i, h_prev):
            row0 = pl.multiple_of(i * Bp, Bp)
            xp = xp_ref[pl.ds(row0, Bp), :]                                  # (Bp, G)
            hp = jnp.dot(h_prev, w_hh, preferred_element_type=jnp.float32)  # (Bp, G)

            # Gate blocks are whole 128-lane vregs: [0:Hp]=r, [Hp:2Hp]=z, [2Hp:3Hp]=n.
            rz = jax.nn.sigmoid(xp[:, : 2 * Hp] + hp[:, : 2 * Hp])
            r = rz[:, :Hp]
            z = rz[:, Hp:]
            n = jnp.tanh(xp[:, 2 * Hp:] + r * (hp[:, 2 * Hp:] + b_hn_b))
            h_new = (1.0 - z) * n + z * h_prev
            if mask_tail:
                # Skip time-padding steps in the last chunk.
                h_new = jnp.where(c * Tc + i < T, h_new, h_prev)
            return h_new

        h0 = h_ref[...]
        h_ref[...] = lax.fori_loop(0, Tc, step, h0, unroll=min(Tc, 8))

    return kernel


def gru_final_hidden(embedded, w_ih_f, w_hh_f, b_in_f, b_hn_f, hid_dim,
                     *, chunk=64, phase1_dtype=jnp.float32):
    """embedded: (T, B, E) float32 -> final hidden (B, H) float32."""
    T, B, E = embedded.shape
    Hp = w_hh_f.shape[0]          # hidden padded to a 128-lane block
    G = w_ih_f.shape[1]           # 3 * Hp
    Bp = _round_up(max(B, 8), 8)  # batch padded to a sublane multiple
    Tc = min(T, chunk)            # time chunk per grid step
    Tp = _round_up(T, Tc)
    num_chunks = Tp // Tc

    x = embedded
    if Tp != T or Bp != B:
        x = jnp.pad(x, ((0, Tp - T), (0, Bp - B), (0, 0)))
    x2d = x.reshape(Tp * Bp, E)

    # Optional reduced-precision phase-1 matmul (biggest win on v5e HBM BW).
    if phase1_dtype != jnp.float32:
        x2d = x2d.astype(phase1_dtype)
        w_ih_f = w_ih_f.astype(phase1_dtype)
    in_bytes = jnp.dtype(x2d.dtype).itemsize

    # Explicit scoped-VMEM budget with headroom (double-buffered inputs,
    # resident output, xp scratch), capped at v7x physical VMEM.
    vmem_est = (2 * Tc * Bp * E * in_bytes
                + 2 * (E * G * in_bytes + 4 * (Hp * G + G + Hp))
                + 4 * (2 * Bp * Hp + Tc * Bp * G)
                + (1 << 20))
    vmem_limit = int(min(max(2 * vmem_est, 4 << 20), 64 << 20))

    kernel = _make_gru_kernel(T, Tc, mask_tail=(Tp != T))

    h = pl.pallas_call(
        kernel,
        out_shape=jax.ShapeDtypeStruct((Bp, Hp), jnp.float32),
        grid_spec=pltpu.PrefetchScalarGridSpec(
            num_scalar_prefetch=0,
            grid=(num_chunks,),
            in_specs=[
                pl.BlockSpec((Tc * Bp, E), lambda c: (c, 0)),   # x chunk (pipelined)
                pl.BlockSpec((E, G), lambda c: (0, 0)),         # w_ih (resident)
                pl.BlockSpec((Hp, G), lambda c: (0, 0)),        # w_hh (resident)
                pl.BlockSpec((1, G), lambda c: (0, 0)),         # combined bias
                pl.BlockSpec((1, Hp), lambda c: (0, 0)),        # n-gate hidden bias
            ],
            out_specs=pl.BlockSpec((Bp, Hp), lambda c: (0, 0)),  # resident carry/out
            scratch_shapes=[pltpu.VMEM((Tc * Bp, G), jnp.float32)],
        ),
        compiler_params=pltpu.CompilerParams(
            dimension_semantics=("arbitrary",),
            vmem_limit_bytes=vmem_limit,
        ),
    )(x2d, w_ih_f, w_hh_f, b_in_f, b_hn_f)
    return h[:B, :hid_dim]


class EncoderParams:
    """Deterministic parameter construction matching nn.Embedding + nn.GRU."""

    def __init__(self, input_dim, emb_dim, hid_dim, pad_idx, key):
        k_emb, k_wih, k_whh, k_bih, k_bhh = jax.random.split(key, 5)
        scale = 1.0 / jnp.sqrt(hid_dim)

        emb = jax.random.normal(k_emb, (input_dim, emb_dim), jnp.float32)
        # padding_idx row is zero (nn.Embedding(padding_idx=...))
        self.embedding = emb.at[pad_idx].set(0.0)

        # Per-gate (r, z, n) parameters in (gate, in, out) layout (x @ W form);
        # this is the transposed view of PyTorch's (3H, in) weight_ih/hh_l0.
        self.w_ih = jax.random.uniform(k_wih, (3, emb_dim, hid_dim), jnp.float32,
                                       -scale, scale)
        self.w_hh = jax.random.uniform(k_whh, (3, hid_dim, hid_dim), jnp.float32,
                                       -scale, scale)
        self.b_ih = jax.random.uniform(k_bih, (3, 1, hid_dim), jnp.float32,
                                       -scale, scale)
        self.b_hh = jax.random.uniform(k_bhh, (3, 1, hid_dim), jnp.float32,
                                       -scale, scale)

        # Fused, per-gate lane-block-padded forms used by the Pallas kernel:
        # each gate occupies its own 128-lane block so in-kernel slices are
        # whole-vreg.  Padded rows/cols are zero (keeps padded lanes inert).
        H, E = hid_dim, emb_dim
        Hp = _round_up(H, 128)
        G = 3 * Hp

        def pad_cols(w):   # (in, H) -> (in, Hp)
            return jnp.pad(w, ((0, 0), (0, Hp - H)))

        def pad_vec(v):    # (H,) -> (Hp,)
            return jnp.pad(v, (0, Hp - H))

        self.w_ih_fused = jnp.concatenate(
            [pad_cols(self.w_ih[g]) for g in range(3)], axis=-1)          # (E, G)
        self.w_hh_fused = jnp.concatenate(
            [jnp.pad(self.w_hh[g], ((0, Hp - H), (0, Hp - H)))
             for g in range(3)], axis=-1)                                  # (Hp, G)
        # Fold b_hh for the r and z gates into the input-projection bias; keep
        # only the n-gate hidden bias separate (it is multiplied by r).
        b_in = jnp.concatenate(
            [pad_vec(self.b_ih[0, 0] + self.b_hh[0, 0]),
             pad_vec(self.b_ih[1, 0] + self.b_hh[1, 0]),
             pad_vec(self.b_ih[2, 0])], axis=-1)
        self.b_in_fused = b_in.reshape(1, G)                               # (1, G)
        self.b_hn_fused = pad_vec(self.b_hh[2, 0]).reshape(1, Hp)          # (1, Hp)
        self.hid_dim = H


def encoder_forward(params, src):
    """src: (T, B) int32 token ids -> hidden: (1, B, H) float32."""
    embedded = jnp.take(params.embedding, src, axis=0)  # (T, B, E)
    hidden = gru_final_hidden(embedded, params.w_ih_fused, params.w_hh_fused,
                              params.b_in_fused, params.b_hn_fused,
                              params.hid_dim)
    return hidden[None]  # (num_layers=1, B, H) like nn.GRU's `hidden`


def encoder_forward_ref(params, src):
    """Pure-JAX reference GRU (lax.scan) for correctness checking."""
    embedded = jnp.take(params.embedding, src, axis=0)
    B = src.shape[1]
    H = params.w_hh.shape[-1]

    def step(h, x_t):
        i_r = x_t @ params.w_ih[0] + params.b_ih[0]
        i_z = x_t @ params.w_ih[1] + params.b_ih[1]
        i_n = x_t @ params.w_ih[2] + params.b_ih[2]
        h_r = h @ params.w_hh[0] + params.b_hh[0]
        h_z = h @ params.w_hh[1] + params.b_hh[1]
        h_n = h @ params.w_hh[2] + params.b_hh[2]
        r = jax.nn.sigmoid(i_r + h_r)
        z = jax.nn.sigmoid(i_z + h_z)
        n = jnp.tanh(i_n + r * h_n)
        h_new = (1.0 - z) * n + z * h
        return h_new, None

    h0 = jnp.zeros((B, H), jnp.float32)
    h_final, _ = jax.lax.scan(step, h0, embedded)
    return h_final[None]


if __name__ == "__main__":
    # Small shapes consistent with the module's forward.
    INPUT_DIM = 16   # vocab size
    EMB_DIM = 32
    HID_DIM = 32
    SEQ_LEN = 8
    BATCH = 2
    PAD_IDX = 0      # vocab_src['<pad>']

    key = jax.random.PRNGKey(0)
    k_params, k_src = jax.random.split(key)

    params = EncoderParams(INPUT_DIM, EMB_DIM, HID_DIM, PAD_IDX, k_params)
    src = jax.random.randint(k_src, (SEQ_LEN, BATCH), 0, INPUT_DIM, jnp.int32)

    hidden = encoder_forward(params, src)
    hidden = jax.block_until_ready(hidden)

    hidden_ref = jax.block_until_ready(encoder_forward_ref(params, src))
    assert hidden.shape == (1, BATCH, HID_DIM)
    assert jnp.allclose(hidden, hidden_ref, atol=1e-5, rtol=1e-5)

    print("KERNEL_OK")
</pallas_src>

<mosaic_0001>
module attributes {stable_mosaic.version = 11 : i64} {
  func.func @kernel(%arg0: i32, %arg1: memref<64x32xf32, #tpu.memory_space<vmem>>, %arg2: memref<32x384xf32, #tpu.memory_space<vmem>>, %arg3: memref<128x384xf32, #tpu.memory_space<vmem>>, %arg4: memref<1x384xf32, #tpu.memory_space<vmem>>, %arg5: memref<1x128xf32, #tpu.memory_space<vmem>>, %arg6: memref<8x128xf32, #tpu.memory_space<vmem>>, %arg7: memref<64x384xf32, #tpu.memory_space<vmem>>) attributes {dimension_semantics = [#tpu.dimension_semantics<arbitrary>], iteration_bounds = array<i64: 1>, scalar_prefetch = 0 : i64, scratch_operands = 1 : i64, tpu.core_type = #tpu.core_type<tc>, window_params = [{transform_indices = @transform_0, window_bounds = array<i64: 64, 32>}, {pipeline_mode = #tpu.pipeline_mode<synchronous>, transform_indices = @transform_1, window_bounds = array<i64: 32, 384>}, {pipeline_mode = #tpu.pipeline_mode<synchronous>, transform_indices = @transform_2, window_bounds = array<i64: 128, 384>}, {pipeline_mode = #tpu.pipeline_mode<synchronous>, transform_indices = @transform_3, window_bounds = array<i64: 1, 384>}, {pipeline_mode = #tpu.pipeline_mode<synchronous>, transform_indices = @transform_4, window_bounds = array<i64: 1, 128>}, {pipeline_mode = #tpu.pipeline_mode<synchronous>, transform_indices = @transform_5, window_bounds = array<i64: 8, 128>}]} {
    %c0 = arith.constant 0 : index
    %c0_0 = arith.constant 0 : index
    %0 = vector.load %arg1[%c0, %c0_0] : memref<64x32xf32, #tpu.memory_space<vmem>>, vector<64x32xf32>
    %c0_1 = arith.constant 0 : index
    %c0_2 = arith.constant 0 : index
    %1 = vector.load %arg2[%c0_1, %c0_2] : memref<32x384xf32, #tpu.memory_space<vmem>>, vector<32x384xf32>
    %cst = arith.constant dense<0.000000e+00> : vector<64x384xf32>
    %2 = tpu.matmul %0, %1, %cst {dimension_numbers = #tpu.dot_dimension_numbers<[1], [0], [0], [1], [0, 0, 1, 1], [], []>} : vector<64x32xf32>, vector<32x384xf32>, vector<64x384xf32> -> vector<64x384xf32>
    %c0_3 = arith.constant 0 : index
    %c0_4 = arith.constant 0 : index
    %3 = vector.load %arg4[%c0_3, %c0_4] : memref<1x384xf32, #tpu.memory_space<vmem>>, vector<1x384xf32>
    %4 = vector.broadcast %3 : vector<1x384xf32> to vector<64x384xf32>
    %5 = arith.addf %2, %4 : vector<64x384xf32>
    %c0_5 = arith.constant 0 : index
    %c0_6 = arith.constant 0 : index
    %6 = vector.load %arg7[%c0_5, %c0_6] : memref<64x384xf32, #tpu.memory_space<vmem>>, vector<64x384xf32>
    tpu.vector_store %arg7[%c0_5, %c0_6], %5 {strides = array<i32>} : memref<64x384xf32, #tpu.memory_space<vmem>>, vector<64x384xf32>,
    %c0_i32 = arith.constant 0 : i32
    %7 = arith.cmpi eq, %arg0, %c0_i32 : i32
    %8 = arith.extui %7 : i1 to i32
    %c0_i32_7 = arith.constant 0 : i32
    %9 = arith.cmpi ne, %8, %c0_i32_7 : i32
    scf.if %9 {
      %cst_57 = arith.constant 0.000000e+00 : f32
      %224 = vector.broadcast %cst_57 : f32 to vector<8x128xf32>
      %c0_58 = arith.constant 0 : index
      %c0_59 = arith.constant 0 : index
      %225 = vector.load %arg6[%c0_58, %c0_59] : memref<8x128xf32, #tpu.memory_space<vmem>>, vector<8x128xf32>
      tpu.vector_store %arg6[%c0_58, %c0_59], %224 {strides = array<i32>} : memref<8x128xf32, #tpu.memory_space<vmem>>, vector<8x128xf32>,
    } else {
    }
    %c0_8 = arith.constant 0 : index
    %c0_9 = arith.constant 0 : index
    %10 = vector.load %arg3[%c0_8, %c0_9] : memref<128x384xf32, #tpu.memory_space<vmem>>, vector<128x384xf32>
    %c0_10 = arith.constant 0 : index
    %c0_11 = arith.constant 0 : index
    %11 = vector.load %arg5[%c0_10, %c0_11] : memref<1x128xf32, #tpu.memory_space<vmem>>, vector<1x128xf32>
    %12 = vector.shape_cast %11 : vector<1x128xf32> to vector<1x128xf32>
    %13 = vector.broadcast %12 : vector<1x128xf32> to vector<8x128xf32>
    %c0_12 = arith.constant 0 : index
    %c0_13 = arith.constant 0 : index
    %14 = vector.load %arg6[%c0_12, %c0_13] : memref<8x128xf32, #tpu.memory_space<vmem>>, vector<8x128xf32>
    %c0_i32_14 = arith.constant 0 : i32
    %c8_i32 = arith.constant 8 : i32
    %15 = arith.muli %c0_i32_14, %c8_i32 : i32
    %16 = tpu.assume_multiple %15, 8 : i32
    %17 = arith.index_cast %16 : i32 to index
    %c0_15 = arith.constant 0 : index
    %18 = vector.load %arg7[%17, %c0_15] : memref<64x384xf32, #tpu.memory_space<vmem>>, vector<8x384xf32>
    %cst_16 = arith.constant dense<0.000000e+00> : vector<8x384xf32>
    %19 = tpu.matmul %14, %10, %cst_16 {dimension_numbers = #tpu.dot_dimension_numbers<[1], [0], [0], [1], [0, 0, 1, 1], [], []>} : vector<8x128xf32>, vector<128x384xf32>, vector<8x384xf32> -> vector<8x384xf32>
    %20 = vector.extract_strided_slice %18 {offsets = [0, 0], sizes = [8, 256], strides = [1, 1]} : vector<8x384xf32> to vector<8x256xf32>
    %21 = vector.extract_strided_slice %19 {offsets = [0, 0], sizes = [8, 256], strides = [1, 1]} : vector<8x384xf32> to vector<8x256xf32>
    %22 = arith.addf %20, %21 : vector<8x256xf32>
    %23 = arith.negf %22 : vector<8x256xf32>
    %24 = math.exp %23 : vector<8x256xf32>
    %cst_17 = arith.constant 1.000000e+00 : f32
    %25 = vector.broadcast %cst_17 : f32 to vector<8x256xf32>
    %26 = arith.addf %25, %24 : vector<8x256xf32>
    %27 = arith.divf %25, %26 : vector<8x256xf32>
    %28 = vector.extract_strided_slice %27 {offsets = [0, 0], sizes = [8, 128], strides = [1, 1]} : vector<8x256xf32> to vector<8x128xf32>
    %29 = vector.extract_strided_slice %27 {offsets = [0, 128], sizes = [8, 128], strides = [1, 1]} : vector<8x256xf32> to vector<8x128xf32>
    %30 = vector.extract_strided_slice %18 {offsets = [0, 256], sizes = [8, 128], strides = [1, 1]} : vector<8x384xf32> to vector<8x128xf32>
    %31 = vector.extract_strided_slice %19 {offsets = [0, 256], sizes = [8, 128], strides = [1, 1]} : vector<8x384xf32> to vector<8x128xf32>
    %32 = arith.addf %31, %13 : vector<8x128xf32>
    %33 = arith.mulf %28, %32 : vector<8x128xf32>
    %34 = arith.addf %30, %33 : vector<8x128xf32>
    %35 = math.tanh %34 : vector<8x128xf32>
    %cst_18 = arith.constant 1.000000e+00 : f32
    %36 = vector.broadcast %cst_18 : f32 to vector<8x128xf32>
    %37 = arith.subf %36, %29 : vector<8x128xf32>
    %38 = arith.mulf %37, %35 : vector<8x128xf32>
    %39 = arith.mulf %29, %14 : vector<8x128xf32>
    %40 = arith.addf %38, %39 : vector<8x128xf32>
    %c1_i32 = arith.constant 1 : i32
    %c8_i32_19 = arith.constant 8 : i32
    %41 = arith.muli %c1_i32, %c8_i32_19 : i32
    %42 = tpu.assume_multiple %41, 8 : i32
    %43 = arith.index_cast %42 : i32 to index
    %c0_20 = arith.constant 0 : index
    %44 = vector.load %arg7[%43, %c0_20] : memref<64x384xf32, #tpu.memory_space<vmem>>, vector<8x384xf32>
    %cst_21 = arith.constant dense<0.000000e+00> : vector<8x384xf32>
    %45 = tpu.matmul %40, %10, %cst_21 {dimension_numbers = #tpu.dot_dimension_numbers<[1], [0], [0], [1], [0, 0, 1, 1], [], []>} : vector<8x128xf32>, vector<128x384xf32>, vector<8x384xf32> -> vector<8x384xf32>
    %46 = vector.extract_strided_slice %44 {offsets = [0, 0], sizes = [8, 256], strides = [1, 1]} : vector<8x384xf32> to vector<8x256xf32>
    %47 = vector.extract_strided_slice %45 {offsets = [0, 0], sizes = [8, 256], strides = [1, 1]} : vector<8x384xf32> to vector<8x256xf32>
    %48 = arith.addf %46, %47 : vector<8x256xf32>
    %49 = arith.negf %48 : vector<8x256xf32>
    %50 = math.exp %49 : vector<8x256xf32>
    %cst_22 = arith.constant 1.000000e+00 : f32
    %51 = vector.broadcast %cst_22 : f32 to vector<8x256xf32>
    %52 = arith.addf %51, %50 : vector<8x256xf32>
    %53 = arith.divf %51, %52 : vector<8x256xf32>
    %54 = vector.extract_strided_slice %53 {offsets = [0, 0], sizes = [8, 128], strides = [1, 1]} : vector<8x256xf32> to vector<8x128xf32>
    %55 = vector.extract_strided_slice %53 {offsets = [0, 128], sizes = [8, 128], strides = [1, 1]} : vector<8x256xf32> to vector<8x128xf32>
    %56 = vector.extract_strided_slice %44 {offsets = [0, 256], sizes = [8, 128], strides = [1, 1]} : vector<8x384xf32> to vector<8x128xf32>
    %57 = vector.extract_strided_slice %45 {offsets = [0, 256], sizes = [8, 128], strides = [1, 1]} : vector<8x384xf32> to vector<8x128xf32>
    %58 = arith.addf %57, %13 : vector<8x128xf32>
    %59 = arith.mulf %54, %58 : vector<8x128xf32>
    %60 = arith.addf %56, %59 : vector<8x128xf32>
    %61 = math.tanh %60 : vector<8x128xf32>
    %cst_23 = arith.constant 1.000000e+00 : f32
    %62 = vector.broadcast %cst_23 : f32 to vector<8x128xf32>
    %63 = arith.subf %62, %55 : vector<8x128xf32>
    %64 = arith.mulf %63, %61 : vector<8x128xf32>
    %65 = arith.mulf %55, %40 : vector<8x128xf32>
    %66 = arith.addf %64, %65 : vector<8x128xf32>
    %c2_i32 = arith.constant 2 : i32
    %c8_i32_24 = arith.constant 8 : i32
    %67 = arith.muli %c2_i32, %c8_i32_24 : i32
    %68 = tpu.assume_multiple %67, 8 : i32
    %69 = arith.index_cast %68 : i32 to index
    %c0_25 = arith.constant 0 : index
    %70 = vector.load %arg7[%69, %c0_25] : memref<64x384xf32, #tpu.memory_space<vmem>>, vector<8x384xf32>
    %cst_26 = arith.constant dense<0.000000e+00> : vector<8x384xf32>
    %71 = tpu.matmul %66, %10, %cst_26 {dimension_numbers = #tpu.dot_dimension_numbers<[1], [0], [0], [1], [0, 0, 1, 1], [], []>} : vector<8x128xf32>, vector<128x384xf32>, vector<8x384xf32> -> vector<8x384xf32>
    %72 = vector.extract_strided_slice %70 {offsets = [0, 0], sizes = [8, 256], strides = [1, 1]} : vector<8x384xf32> to vector<8x256xf32>
    %73 = vector.extract_strided_slice %71 {offsets = [0, 0], sizes = [8, 256], strides = [1, 1]} : vector<8x384xf32> to vector<8x256xf32>
    %74 = arith.addf %72, %73 : vector<8x256xf32>
    %75 = arith.negf %74 : vector<8x256xf32>
    %76 = math.exp %75 : vector<8x256xf32>
    %cst_27 = arith.constant 1.000000e+00 : f32
    %77 = vector.broadcast %cst_27 : f32 to vector<8x256xf32>
    %78 = arith.addf %77, %76 : vector<8x256xf32>
    %79 = arith.divf %77, %78 : vector<8x256xf32>
    %80 = vector.extract_strided_slice %79 {offsets = [0, 0], sizes = [8, 128], strides = [1, 1]} : vector<8x256xf32> to vector<8x128xf32>
    %81 = vector.extract_strided_slice %79 {offsets = [0, 128], sizes = [8, 128], strides = [1, 1]} : vector<8x256xf32> to vector<8x128xf32>
    %82 = vector.extract_strided_slice %70 {offsets = [0, 256], sizes = [8, 128], strides = [1, 1]} : vector<8x384xf32> to vector<8x128xf32>
    %83 = vector.extract_strided_slice %71 {offsets = [0, 256], sizes = [8, 128], strides = [1, 1]} : vector<8x384xf32> to vector<8x128xf32>
    %84 = arith.addf %83, %13 : vector<8x128xf32>
    %85 = arith.mulf %80, %84 : vector<8x128xf32>
    %86 = arith.addf %82, %85 : vector<8x128xf32>
    %87 = math.tanh %86 : vector<8x128xf32>
    %cst_28 = arith.constant 1.000000e+00 : f32
    %88 = vector.broadcast %cst_28 : f32 to vector<8x128xf32>
    %89 = arith.subf %88, %81 : vector<8x128xf32>
    %90 = arith.mulf %89, %87 : vector<8x128xf32>
    %91 = arith.mulf %81, %66 : vector<8x128xf32>
    %92 = arith.addf %90, %91 : vector<8x128xf32>
    %c3_i32 = arith.constant 3 : i32
    %c8_i32_29 = arith.constant 8 : i32
    %93 = arith.muli %c3_i32, %c8_i32_29 : i32
    %94 = tpu.assume_multiple %93, 8 : i32
    %95 = arith.index_cast %94 : i32 to index
    %c0_30 = arith.constant 0 : index
    %96 = vector.load %arg7[%95, %c0_30] : memref<64x384xf32, #tpu.memory_space<vmem>>, vector<8x384xf32>
    %cst_31 = arith.constant dense<0.000000e+00> : vector<8x384xf32>
    %97 = tpu.matmul %92, %10, %cst_31 {dimension_numbers = #tpu.dot_dimension_numbers<[1], [0], [0], [1], [0, 0, 1, 1], [], []>} : vector<8x128xf32>, vector<128x384xf32>, vector<8x384xf32> -> vector<8x384xf32>
    %98 = vector.extract_strided_slice %96 {offsets = [0, 0], sizes = [8, 256], strides = [1, 1]} : vector<8x384xf32> to vector<8x256xf32>
    %99 = vector.extract_strided_slice %97 {offsets = [0, 0], sizes = [8, 256], strides = [1, 1]} : vector<8x384xf32> to vector<8x256xf32>
    %100 = arith.addf %98, %99 : vector<8x256xf32>
    %101 = arith.negf %100 : vector<8x256xf32>
    %102 = math.exp %101 : vector<8x256xf32>
    %cst_32 = arith.constant 1.000000e+00 : f32
    %103 = vector.broadcast %cst_32 : f32 to vector<8x256xf32>
    %104 = arith.addf %103, %102 : vector<8x256xf32>
    %105 = arith.divf %103, %104 : vector<8x256xf32>
    %106 = vector.extract_strided_slice %105 {offsets = [0, 0], sizes = [8, 128], strides = [1, 1]} : vector<8x256xf32> to vector<8x128xf32>
    %107 = vector.extract_strided_slice %105 {offsets = [0, 128], sizes = [8, 128], strides = [1, 1]} : vector<8x256xf32> to vector<8x128xf32>
    %108 = vector.extract_strided_slice %96 {offsets = [0, 256], sizes = [8, 128], strides = [1, 1]} : vector<8x384xf32> to vector<8x128xf32>
    %109 = vector.extract_strided_slice %97 {offsets = [0, 256], sizes = [8, 128], strides = [1, 1]} : vector<8x384xf32> to vector<8x128xf32>
    %110 = arith.addf %109, %13 : vector<8x128xf32>
    %111 = arith.mulf %106, %110 : vector<8x128xf32>
    %112 = arith.addf %108, %111 : vector<8x128xf32>
    %113 = math.tanh %112 : vector<8x128xf32>
    %cst_33 = arith.constant 1.000000e+00 : f32
    %114 = vector.broadcast %cst_33 : f32 to vector<8x128xf32>
    %115 = arith.subf %114, %107 : vector<8x128xf32>
    %116 = arith.mulf %115, %113 : vector<8x128xf32>
    %117 = arith.mulf %107, %92 : vector<8x128xf32>
    %118 = arith.addf %116, %117 : vector<8x128xf32>
    %c4_i32 = arith.constant 4 : i32
    %c8_i32_34 = arith.constant 8 : i32
    %119 = arith.muli %c4_i32, %c8_i32_34 : i32
    %120 = tpu.assume_multiple %119, 8 : i32
    %121 = arith.index_cast %120 : i32 to index
    %c0_35 = arith.constant 0 : index
    %122 = vector.load %arg7[%121, %c0_35] : memref<64x384xf32, #tpu.memory_space<vmem>>, vector<8x384xf32>
    %cst_36 = arith.constant dense<0.000000e+00> : vector<8x384xf32>
    %123 = tpu.matmul %118, %10, %cst_36 {dimension_numbers = #tpu.dot_dimension_numbers<[1], [0], [0], [1], [0, 0, 1, 1], [], []>} : vector<8x128xf32>, vector<128x384xf32>, vector<8x384xf32> -> vector<8x384xf32>
    %124 = vector.extract_strided_slice %122 {offsets = [0, 0], sizes = [8, 256], strides = [1, 1]} : vector<8x384xf32> to vector<8x256xf32>
    %125 = vector.extract_strided_slice %123 {offsets = [0, 0], sizes = [8, 256], strides = [1, 1]} : vector<8x384xf32> to vector<8x256xf32>
    %126 = arith.addf %124, %125 : vector<8x256xf32>
    %127 = arith.negf %126 : vector<8x256xf32>
    %128 = math.exp %127 : vector<8x256xf32>
    %cst_37 = arith.constant 1.000000e+00 : f32
    %129 = vector.broadcast %cst_37 : f32 to vector<8x256xf32>
    %130 = arith.addf %129, %128 : vector<8x256xf32>
    %131 = arith.divf %129, %130 : vector<8x256xf32>
    %132 = vector.extract_strided_slice %131 {offsets = [0, 0], sizes = [8, 128], strides = [1, 1]} : vector<8x256xf32> to vector<8x128xf32>
    %133 = vector.extract_strided_slice %131 {offsets = [0, 128], sizes = [8, 128], strides = [1, 1]} : vector<8x256xf32> to vector<8x128xf32>
    %134 = vector.extract_strided_slice %122 {offsets = [0, 256], sizes = [8, 128], strides = [1, 1]} : vector<8x384xf32> to vector<8x128xf32>
    %135 = vector.extract_strided_slice %123 {offsets = [0, 256], sizes = [8, 128], strides = [1, 1]} : vector<8x384xf32> to vector<8x128xf32>
    %136 = arith.addf %135, %13 : vector<8x128xf32>
    %137 = arith.mulf %132, %136 : vector<8x128xf32>
    %138 = arith.addf %134, %137 : vector<8x128xf32>
    %139 = math.tanh %138 : vector<8x128xf32>
    %cst_38 = arith.constant 1.000000e+00 : f32
    %140 = vector.broadcast %cst_38 : f32 to vector<8x128xf32>
    %141 = arith.subf %140, %133 : vector<8x128xf32>
    %142 = arith.mulf %141, %139 : vector<8x128xf32>
    %143 = arith.mulf %133, %118 : vector<8x128xf32>
    %144 = arith.addf %142, %143 : vector<8x128xf32>
    %c5_i32 = arith.constant 5 : i32
    %c8_i32_39 = arith.constant 8 : i32
    %145 = arith.muli %c5_i32, %c8_i32_39 : i32
    %146 = tpu.assume_multiple %145, 8 : i32
    %147 = arith.index_cast %146 : i32 to index
    %c0_40 = arith.constant 0 : index
    %148 = vector.load %arg7[%147, %c0_40] : memref<64x384xf32, #tpu.memory_space<vmem>>, vector<8x384xf32>
    %cst_41 = arith.constant dense<0.000000e+00> : vector<8x384xf32>
    %149 = tpu.matmul %144, %10, %cst_41 {dimension_numbers = #tpu.dot_dimension_numbers<[1], [0], [0], [1], [0, 0, 1, 1], [], []>} : vector<8x128xf32>, vector<128x384xf32>, vector<8x384xf32> -> vector<8x384xf32>
    %150 = vector.extract_strided_slice %148 {offsets = [0, 0], sizes = [8, 256], strides = [1, 1]} : vector<8x384xf32> to vector<8x256xf32>
    %151 = vector.extract_strided_slice %149 {offsets = [0, 0], sizes = [8, 256], strides = [1, 1]} : vector<8x384xf32> to vector<8x256xf32>
    %152 = arith.addf %150, %151 : vector<8x256xf32>
    %153 = arith.negf %152 : vector<8x256xf32>
    %154 = math.exp %153 : vector<8x256xf32>
    %cst_42 = arith.constant 1.000000e+00 : f32
    %155 = vector.broadcast %cst_42 : f32 to vector<8x256xf32>
    %156 = arith.addf %155, %154 : vector<8x256xf32>
    %157 = arith.divf %155, %156 : vector<8x256xf32>
    %158 = vector.extract_strided_slice %157 {offsets = [0, 0], sizes = [8, 128], strides = [1, 1]} : vector<8x256xf32> to vector<8x128xf32>
    %159 = vector.extract_strided_slice %157 {offsets = [0, 128], sizes = [8, 128], strides = [1, 1]} : vector<8x256xf32> to vector<8x128xf32>
    %160 = vector.extract_strided_slice %148 {offsets = [0, 256], sizes = [8, 128], strides = [1, 1]} : vector<8x384xf32> to vector<8x128xf32>
    %161 = vector.extract_strided_slice %149 {offsets = [0, 256], sizes = [8, 128], strides = [1, 1]} : vector<8x384xf32> to vector<8x128xf32>
    %162 = arith.addf %161, %13 : vector<8x128xf32>
    %163 = arith.mulf %158, %162 : vector<8x128xf32>
    %164 = arith.addf %160, %163 : vector<8x128xf32>
    %165 = math.tanh %164 : vector<8x128xf32>
    %cst_43 = arith.constant 1.000000e+00 : f32
    %166 = vector.broadcast %cst_43 : f32 to vector<8x128xf32>
    %167 = arith.subf %166, %159 : vector<8x128xf32>
    %168 = arith.mulf %167, %165 : vector<8x128xf32>
    %169 = arith.mulf %159, %144 : vector<8x128xf32>
    %170 = arith.addf %168, %169 : vector<8x128xf32>
    %c6_i32 = arith.constant 6 : i32
    %c8_i32_44 = arith.constant 8 : i32
    %171 = arith.muli %c6_i32, %c8_i32_44 : i32
    %172 = tpu.assume_multiple %171, 8 : i32
    %173 = arith.index_cast %172 : i32 to index
    %c0_45 = arith.constant 0 : index
    %174 = vector.load %arg7[%173, %c0_45] : memref<64x384xf32, #tpu.memory_space<vmem>>, vector<8x384xf32>
    %cst_46 = arith.constant dense<0.000000e+00> : vector<8x384xf32>
    %175 = tpu.matmul %170, %10, %cst_46 {dimension_numbers = #tpu.dot_dimension_numbers<[1], [0], [0], [1], [0, 0, 1, 1], [], []>} : vector<8x128xf32>, vector<128x384xf32>, vector<8x384xf32> -> vector<8x384xf32>
    %176 = vector.extract_strided_slice %174 {offsets = [0, 0], sizes = [8, 256], strides = [1, 1]} : vector<8x384xf32> to vector<8x256xf32>
    %177 = vector.extract_strided_slice %175 {offsets = [0, 0], sizes = [8, 256], strides = [1, 1]} : vector<8x384xf32> to vector<8x256xf32>
    %178 = arith.addf %176, %177 : vector<8x256xf32>
    %179 = arith.negf %178 : vector<8x256xf32>
    %180 = math.exp %179 : vector<8x256xf32>
    %cst_47 = arith.constant 1.000000e+00 : f32
    %181 = vector.broadcast %cst_47 : f32 to vector<8x256xf32>
    %182 = arith.addf %181, %180 : vector<8x256xf32>
    %183 = arith.divf %181, %182 : vector<8x256xf32>
    %184 = vector.extract_strided_slice %183 {offsets = [0, 0], sizes = [8, 128], strides = [1, 1]} : vector<8x256xf32> to vector<8x128xf32>
    %185 = vector.extract_strided_slice %183 {offsets = [0, 128], sizes = [8, 128], strides = [1, 1]} : vector<8x256xf32> to vector<8x128xf32>
    %186 = vector.extract_strided_slice %174 {offsets = [0, 256], sizes = [8, 128], strides = [1, 1]} : vector<8x384xf32> to vector<8x128xf32>
    %187 = vector.extract_strided_slice %175 {offsets = [0, 256], sizes = [8, 128], strides = [1, 1]} : vector<8x384xf32> to vector<8x128xf32>
    %188 = arith.addf %187, %13 : vector<8x128xf32>
    %189 = arith.mulf %184, %188 : vector<8x128xf32>
    %190 = arith.addf %186, %189 : vector<8x128xf32>
    %191 = math.tanh %190 : vector<8x128xf32>
    %cst_48 = arith.constant 1.000000e+00 : f32
    %192 = vector.broadcast %cst_48 : f32 to vector<8x128xf32>
    %193 = arith.subf %192, %185 : vector<8x128xf32>
    %194 = arith.mulf %193, %191 : vector<8x128xf32>
    %195 = arith.mulf %185, %170 : vector<8x128xf32>
    %196 = arith.addf %194, %195 : vector<8x128xf32>
    %c7_i32 = arith.constant 7 : i32
    %c8_i32_49 = arith.constant 8 : i32
    %197 = arith.muli %c7_i32, %c8_i32_49 : i32
    %198 = tpu.assume_multiple %197, 8 : i32
    %199 = arith.index_cast %198 : i32 to index
    %c0_50 = arith.constant 0 : index
    %200 = vector.load %arg7[%199, %c0_50] : memref<64x384xf32, #tpu.memory_space<vmem>>, vector<8x384xf32>
    %cst_51 = arith.constant dense<0.000000e+00> : vector<8x384xf32>
    %201 = tpu.matmul %196, %10, %cst_51 {dimension_numbers = #tpu.dot_dimension_numbers<[1], [0], [0], [1], [0, 0, 1, 1], [], []>} : vector<8x128xf32>, vector<128x384xf32>, vector<8x384xf32> -> vector<8x384xf32>
    %202 = vector.extract_strided_slice %200 {offsets = [0, 0], sizes = [8, 256], strides = [1, 1]} : vector<8x384xf32> to vector<8x256xf32>
    %203 = vector.extract_strided_slice %201 {offsets = [0, 0], sizes = [8, 256], strides = [1, 1]} : vector<8x384xf32> to vector<8x256xf32>
    %204 = arith.addf %202, %203 : vector<8x256xf32>
    %205 = arith.negf %204 : vector<8x256xf32>
    %206 = math.exp %205 : vector<8x256xf32>
    %cst_52 = arith.constant 1.000000e+00 : f32
    %207 = vector.broadcast %cst_52 : f32 to vector<8x256xf32>
    %208 = arith.addf %207, %206 : vector<8x256xf32>
    %209 = arith.divf %207, %208 : vector<8x256xf32>
    %210 = vector.extract_strided_slice %209 {offsets = [0, 0], sizes = [8, 128], strides = [1, 1]} : vector<8x256xf32> to vector<8x128xf32>
    %211 = vector.extract_strided_slice %209 {offsets = [0, 128], sizes = [8, 128], strides = [1, 1]} : vector<8x256xf32> to vector<8x128xf32>
    %212 = vector.extract_strided_slice %200 {offsets = [0, 256], sizes = [8, 128], strides = [1, 1]} : vector<8x384xf32> to vector<8x128xf32>
    %213 = vector.extract_strided_slice %201 {offsets = [0, 256], sizes = [8, 128], strides = [1, 1]} : vector<8x384xf32> to vector<8x128xf32>
    %214 = arith.addf %213, %13 : vector<8x128xf32>
    %215 = arith.mulf %210, %214 : vector<8x128xf32>
    %216 = arith.addf %212, %215 : vector<8x128xf32>
    %217 = math.tanh %216 : vector<8x128xf32>
    %cst_53 = arith.constant 1.000000e+00 : f32
    %218 = vector.broadcast %cst_53 : f32 to vector<8x128xf32>
    %219 = arith.subf %218, %211 : vector<8x128xf32>
    %220 = arith.mulf %219, %217 : vector<8x128xf32>
    %221 = arith.mulf %211, %196 : vector<8x128xf32>
    %222 = arith.addf %220, %221 : vector<8x128xf32>
    %c8_i32_54 = arith.constant 8 : i32
    %c0_55 = arith.constant 0 : index
    %c0_56 = arith.constant 0 : index
    %223 = vector.load %arg6[%c0_55, %c0_56] : memref<8x128xf32, #tpu.memory_space<vmem>>, vector<8x128xf32>
    tpu.vector_store %arg6[%c0_55, %c0_56], %222 {strides = array<i32>} : memref<8x128xf32, #tpu.memory_space<vmem>>, vector<8x128xf32>,
    return
  }
  func.func @transform_0(%arg0: i32) -> (i32, i32) {
    %c0_i32 = arith.constant 0 : i32
    %c0_i32_0 = arith.constant 0 : i32
    return %arg0, %c0_i32 : i32, i32
  }
  func.func @transform_1(%arg0: i32) -> (i32, i32) {
    %c0_i32 = arith.constant 0 : i32
    %c0_i32_0 = arith.constant 0 : i32
    %c0_i32_1 = arith.constant 0 : i32
    return %c0_i32, %c0_i32_0 : i32, i32
  }
  func.func @transform_2(%arg0: i32) -> (i32, i32) {
    %c0_i32 = arith.constant 0 : i32
    %c0_i32_0 = arith.constant 0 : i32
    %c0_i32_1 = arith.constant 0 : i32
    return %c0_i32, %c0_i32_0 : i32, i32
  }
  func.func @transform_3(%arg0: i32) -> (i32, i32) {
    %c0_i32 = arith.constant 0 : i32
    %c0_i32_0 = arith.constant 0 : i32
    %c0_i32_1 = arith.constant 0 : i32
    return %c0_i32, %c0_i32_0 : i32, i32
  }
  func.func @transform_4(%arg0: i32) -> (i32, i32) {
    %c0_i32 = arith.constant 0 : i32
    %c0_i32_0 = arith.constant 0 : i32
    %c0_i32_1 = arith.constant 0 : i32
    return %c0_i32, %c0_i32_0 : i32, i32
  }
  func.func @transform_5(%arg0: i32) -> (i32, i32) {
    %c0_i32 = arith.constant 0 : i32
    %c0_i32_0 = arith.constant 0 : i32
    %c0_i32_1 = arith.constant 0 : i32
    return %c0_i32, %c0_i32_0 : i32, i32
  }
}

</mosaic_0001>

<llo_original>
// kernel: tpu_custom_call.1
$region0: #{tpu_custom_call.1}
  #allocation0 [shape = 'u32[]', space=smem, size = 0x4, offset = 0x4, fixed_abs, tag = 'smem constant byte address 0x4 - core index']
  #allocation1 [shape = 'u32[72,128]{1,0:T(1,128)}', space=vmem, size = 0x9000, scoped, tag = 'internal scratch']
  #allocation2 [shape = 'f32[64,384]{1,0:T(8,128)}', space=vmem, size = 0x18000, scoped, tag = 'scratch operand']
  %s0 = inlined_call_operand.vmem [shape: f32[64,32], index: 0, kind: input, shape index: {}]
  %s1 = inlined_call_operand.vmem [shape: f32[32,384], index: 1, kind: input, shape index: {}]
  %s2 = inlined_call_operand.hbm [shape: f32[128,384], index: 2, kind: input, shape index: {}]
  %s3 = inlined_call_operand.hbm [shape: f32[1,384], index: 3, kind: input, shape index: {}]
  %s4 = inlined_call_operand.vmem [shape: f32[1,128], index: 4, kind: input, shape index: {}]
  %s5 = inlined_call_operand.hbm [shape: f32[8,128], index: 5, kind: output, shape index: {}]
  %s6 = sld [smem:[#allocation0]]
  $region42: #{tpu_custom_call.1} parent=0
    _
  %s8 = ssub.s32 1, %s6
  %s9 = scalar_select 0, %s8, %s6
  $region1: #{tpu_custom_call.1} parent=0
    #allocation3 [shape = 'u8[196608]{0}', space=vmem, size = 0x30000, scoped, tag = 'input window, operand 2, single buffered']
    #allocation4 [shape = 's32[1]{0}', space=sflag, size = 0x4, scoped, tag = 'scoped memory for tpu_custom_call.1']
    #allocation5 [shape = 's32[1]{0}', space=sflag, size = 0x4, scoped, tag = 'scoped memory for tpu_custom_call.1']
    #allocation6 [shape = 'u8[1536]{0}', space=vmem, size = 0x800, scoped, tag = 'input window, operand 3, single buffered']
    #allocation7 [shape = 's32[1]{0}', space=sflag, size = 0x4, scoped, tag = 'scoped memory for tpu_custom_call.1']
    #allocation8 [shape = 'u8[4096]{0}', space=vmem, size = 0x1000, scoped, tag = 'output window, operand 0, single buffered']
    %10 = vsyncpa [#allocation4], 0
    %11 = vsyncpa [#allocation7], 0
    %12 = vsyncpa [#allocation5], 0
    // Predicated region
    $region2: #{tpu_custom_call.1} parent=1 // pred_check
      _
    $region3: #{tpu_custom_call.1} parent=1 // pred_check_branch
      %14 = sbr.rel (0) target = $region5
    $region4: #{tpu_custom_call.1} parent=1 // pred_region
      _
    $region5: #{tpu_custom_call.1} parent=1 // pred_fallthru
      _
    // Predicated region
    $region6: #{tpu_custom_call.1} parent=1 // pred_check
      _
    $region7: #{tpu_custom_call.1} parent=1 // pred_check_branch
      %16 = sbr.rel (0) target = $region9
    $region8: #{tpu_custom_call.1} parent=1 // pred_region
      _
    $region9: #{tpu_custom_call.1} parent=1 // pred_fallthru
      _
    // Predicated region
    $region10: #{tpu_custom_call.1} parent=1 // pred_check
      _
    $region11: #{tpu_custom_call.1} parent=1 // pred_check_branch
      %18 = sbr.rel (0) target = $region13
    $region12: #{tpu_custom_call.1} parent=1 // pred_region
      %20 = vsyncadd [#allocation4], 0
      %s21 = sshll.u32 %s2, 4
      %s22 = int_to_ptr.hbm [resolvable:$true] %s21
      %s23 = sshll.u32 [#allocation3], 4
      %s24 = int_to_ptr.vmem [resolvable:$true] %s23
      %29 = dma.hbm_to_vmem [thread:$0]  %s22, 6144, %s24, [#allocation4], 384, 384, 24
    $region13: #{tpu_custom_call.1} parent=1 // pred_fallthru
      _
    // Predicated region
    $region14: #{tpu_custom_call.1} parent=1 // pred_check
      _
    $region15: #{tpu_custom_call.1} parent=1 // pred_check_branch
      %31 = sbr.rel (0) target = $region17
    $region16: #{tpu_custom_call.1} parent=1 // pred_region
      %33 = vsyncadd [#allocation7], 0
      %s35 = sshll.u32 %s3, 4
      %s36 = int_to_ptr.hbm [resolvable:$true] %s35
      %s37 = sshll.u32 [#allocation6], 4
      %s38 = int_to_ptr.vmem [resolvable:$true] %s37
      %40 = dma.hbm_to_vmem [thread:$0]  %s36, 48, %s38, [#allocation7]
    $region17: #{tpu_custom_call.1} parent=1 // pred_fallthru
      _
    // Predicated region
    $region18: #{tpu_custom_call.1} parent=1 // pred_check
      _
    $region19: #{tpu_custom_call.1} parent=1 // pred_check_branch
      %42 = sbr.rel (0) target = $region21
    $region20: #{tpu_custom_call.1} parent=1 // pred_region
      _
    $region21: #{tpu_custom_call.1} parent=1 // pred_fallthru
      _
    // Predicated region
    $region22: #{tpu_custom_call.1} parent=1 // pred_check
      _
    $region23: #{tpu_custom_call.1} parent=1 // pred_check_branch
      %44 = sbr.rel (0) target = $region25
    $region24: #{tpu_custom_call.1} parent=1 // pred_region
      %46 = dma.done [#allocation4], 6144
    $region25: #{tpu_custom_call.1} parent=1 // pred_fallthru
      _
    // Predicated region
    $region26: #{tpu_custom_call.1} parent=1 // pred_check
      _
    $region27: #{tpu_custom_call.1} parent=1 // pred_check_branch
      %48 = sbr.rel (0) target = $region29
    $region28: #{tpu_custom_call.1} parent=1 // pred_region
      %50 = dma.done [#allocation7], 48
    $region29: #{tpu_custom_call.1} parent=1 // pred_fallthru
      _
    %v51 = vld [vmem:[%s0] sm:$0xff]
    %v52 = vld [vmem:[%s0 + $0x8] sm:$0xff]
    %v53 = vld [vmem:[%s0 + $0x10] sm:$0xff]
    %v54 = vld [vmem:[%s0 + $0x18] sm:$0xff]
    %v55 = vld [vmem:[%s0 + $0x20] sm:$0xff]
    %v56 = vld [vmem:[%s0 + $0x28] sm:$0xff]
    %v57 = vld [vmem:[%s0 + $0x30] sm:$0xff]
    %v58 = vld [vmem:[%s0 + $0x38] sm:$0xff]
    %v59 = vld [vmem:[%s1] sm:$0xff]
    %v60 = vld [vmem:[%s1 + $0x8] sm:$0xff]
    %v61 = vld [vmem:[%s1 + $0x10] sm:$0xff]
    %v62 = vld [vmem:[%s1 + $0x18] sm:$0xff]
    %v63 = vld [vmem:[%s1 + $0x20] sm:$0xff]
    %v64 = vld [vmem:[%s1 + $0x28] sm:$0xff]
    %v65 = vld [vmem:[%s1 + $0x30] sm:$0xff]
    %v66 = vld [vmem:[%s1 + $0x38] sm:$0xff]
    %v67 = vld [vmem:[%s1 + $0x40] sm:$0xff]
    %v68 = vld [vmem:[%s1 + $0x48] sm:$0xff]
    %v69 = vld [vmem:[%s1 + $0x50] sm:$0xff]
    %v70 = vld [vmem:[%s1 + $0x58] sm:$0xff]
    %v71 = vld [vmem:[#allocation6] sm:$0x7]
    %v73 = vperm.slane %v71, 0
    %v74 = vperm.slane %v71, 1
    %v75 = vperm.slane %v71, 2
    %vm79 = vcmask 261120
    %v81 = vsel %vm79, %v51, 0
    %v84 = vsel %vm79, %v52, 0
    %v87 = vsel %vm79, %v53, 0
    %v90 = vsel %vm79, %v54, 0
    %v93 = vsel %vm79, %v55, 0
    %v96 = vsel %vm79, %v56, 0
    %v99 = vsel %vm79, %v57, 0
    %v102 = vsel %vm79, %v58, 0
    %104 = vmatpush.msra.mxu0 0.0
    %105 = vmatpush.msra.mxu0 0.0
    %106 = vmatpush.msra.mxu0 0.0
    %107 = vmatpush.msra.mxu0 0.0
    %108 = vmatpush.msra.mxu0 0.0
    %109 = vmatpush.msra.mxu0 0.0
    %110 = vmatpush.msra.mxu0 0.0
    %111 = vmatpush.msra.mxu0 0.0
    %112 = vmatpush.msra.mxu0 0.0
    %113 = vmatpush.msra.mxu0 0.0
    %114 = vmatpush.msra.mxu0 0.0
    %115 = vmatpush.msra.mxu0 0.0
    %116 = vmatpush.msra.mxu0 %v68
    %117 = vmatpush.msra.mxu0 %v65
    %118 = vmatpush.msra.mxu0 %v62
    %119 = vmatpush.msra.mxu0 %v59
    %120 = vmatmul.f32.gmra.mxu0 %v81
    %v121 = vpop.f32.mrf.mxu0
    %v122 = vadd.f32 %v73, %v121
    %123 = vmatmul.f32.gmra.mxu0 %v84
    %v124 = vpop.f32.mrf.mxu0
    %v125 = vadd.f32 %v73, %v124
    %126 = vmatmul.f32.gmra.mxu0 %v87
    %v127 = vpop.f32.mrf.mxu0
    %v128 = vadd.f32 %v73, %v127
    %129 = vmatmul.f32.gmra.mxu0 %v90
    %v130 = vpop.f32.mrf.mxu0
    %v131 = vadd.f32 %v73, %v130
    %132 = vmatmul.f32.gmra.mxu0 %v93
    %v133 = vpop.f32.mrf.mxu0
    %v134 = vadd.f32 %v73, %v133
    %135 = vmatmul.f32.gmra.mxu0 %v96
    %v136 = vpop.f32.mrf.mxu0
    %v137 = vadd.f32 %v73, %v136
    %138 = vmatmul.f32.gmra.mxu0 %v99
    %v139 = vpop.f32.mrf.mxu0
    %v140 = vadd.f32 %v73, %v139
    %141 = vmatmul.f32.gmra.mxu0 %v102
    %v142 = vpop.f32.mrf.mxu0
    %v143 = vadd.f32 %v73, %v142
    %144 = vdwg.mxu0
    %145 = vmatpush.msra.mxu0 0.0
    %146 = vmatpush.msra.mxu0 0.0
    %147 = vmatpush.msra.mxu0 0.0
    %148 = vmatpush.msra.mxu0 0.0
    %149 = vmatpush.msra.mxu0 0.0
    %150 = vmatpush.msra.mxu0 0.0
    %151 = vmatpush.msra.mxu0 0.0
    %152 = vmatpush.msra.mxu0 0.0
    %153 = vmatpush.msra.mxu0 0.0
    %154 = vmatpush.msra.mxu0 0.0
    %155 = vmatpush.msra.mxu0 0.0
    %156 = vmatpush.msra.mxu0 0.0
    %157 = vmatpush.msra.mxu0 %v69
    %158 = vmatpush.msra.mxu0 %v66
    %159 = vmatpush.msra.mxu0 %v63
    %160 = vmatpush.msra.mxu0 %v60
    %161 = vmatmul.f32.gmra.mxu0 %v81
    %v162 = vpop.f32.mrf.mxu0
    %v163 = vadd.f32 %v74, %v162
    %164 = vmatmul.f32.gmra.mxu0 %v84
    %v165 = vpop.f32.mrf.mxu0
    %v166 = vadd.f32 %v74, %v165
    %167 = vmatmul.f32.gmra.mxu0 %v87
    %v168 = vpop.f32.mrf.mxu0
    %v169 = vadd.f32 %v74, %v168
    %170 = vmatmul.f32.gmra.mxu0 %v90
    %v171 = vpop.f32.mrf.mxu0
    %v172 = vadd.f32 %v74, %v171
    %173 = vmatmul.f32.gmra.mxu0 %v93
    %v174 = vpop.f32.mrf.mxu0
    %v175 = vadd.f32 %v74, %v174
    %176 = vmatmul.f32.gmra.mxu0 %v96
    %v177 = vpop.f32.mrf.mxu0
    %v178 = vadd.f32 %v74, %v177
    %179 = vmatmul.f32.gmra.mxu0 %v99
    %v180 = vpop.f32.mrf.mxu0
    %v181 = vadd.f32 %v74, %v180
    %182 = vmatmul.f32.gmra.mxu0 %v102
    %v183 = vpop.f32.mrf.mxu0
    %v184 = vadd.f32 %v74, %v183
    %185 = vdwg.mxu0
    %186 = vmatpush.msra.mxu0 0.0
    %187 = vmatpush.msra.mxu0 0.0
    %188 = vmatpush.msra.mxu0 0.0
    %189 = vmatpush.msra.mxu0 0.0
    %190 = vmatpush.msra.mxu0 0.0
    %191 = vmatpush.msra.mxu0 0.0
    %192 = vmatpush.msra.mxu0 0.0
    %193 = vmatpush.msra.mxu0 0.0
    %194 = vmatpush.msra.mxu0 0.0
    %195 = vmatpush.msra.mxu0 0.0
    %196 = vmatpush.msra.mxu0 0.0
    %197 = vmatpush.msra.mxu0 0.0
    %198 = vmatpush.msra.mxu0 %v70
    %199 = vmatpush.msra.mxu0 %v67
    %200 = vmatpush.msra.mxu0 %v64
    %201 = vmatpush.msra.mxu0 %v61
    %202 = vmatmul.f32.gmra.mxu0 %v81
    %v203 = vpop.f32.mrf.mxu0
    %v204 = vadd.f32 %v75, %v203
    %205 = vmatmul.f32.gmra.mxu0 %v84
    %v206 = vpop.f32.mrf.mxu0
    %v207 = vadd.f32 %v75, %v206
    %208 = vmatmul.f32.gmra.mxu0 %v87
    %v209 = vpop.f32.mrf.mxu0
    %v210 = vadd.f32 %v75, %v209
    %211 = vmatmul.f32.gmra.mxu0 %v90
    %v212 = vpop.f32.mrf.mxu0
    %v213 = vadd.f32 %v75, %v212
    %214 = vmatmul.f32.gmra.mxu0 %v93
    %v215 = vpop.f32.mrf.mxu0
    %v216 = vadd.f32 %v75, %v215
    %217 = vmatmul.f32.gmra.mxu0 %v96
    %v218 = vpop.f32.mrf.mxu0
    %v219 = vadd.f32 %v75, %v218
    %220 = vmatmul.f32.gmra.mxu0 %v99
    %v221 = vpop.f32.mrf.mxu0
    %v222 = vadd.f32 %v75, %v221
    %223 = vmatmul.f32.gmra.mxu0 %v102
    %v224 = vpop.f32.mrf.mxu0
    %v225 = vadd.f32 %v75, %v224
    %226 = vdwg.mxu0
    %227 = vst [vmem:[#allocation2] sm:$0xff] %v122
    %228 = vst [vmem:[#allocation2 + $0x8] sm:$0xff] %v163
    %229 = vst [vmem:[#allocation2 + $0x10] sm:$0xff] %v204
    %230 = vst [vmem:[#allocation2 + $0x18] sm:$0xff] %v125
    %231 = vst [vmem:[#allocation2 + $0x20] sm:$0xff] %v166
    %232 = vst [vmem:[#allocation2 + $0x28] sm:$0xff] %v207
    %233 = vst [vmem:[#allocation2 + $0x30] sm:$0xff] %v128
    %234 = vst [vmem:[#allocation2 + $0x38] sm:$0xff] %v169
    %235 = vst [vmem:[#allocation2 + $0x40] sm:$0xff] %v210
    %236 = vst [vmem:[#allocation2 + $0x48] sm:$0xff] %v131
    %237 = vst [vmem:[#allocation2 + $0x50] sm:$0xff] %v172
    %238 = vst [vmem:[#allocation2 + $0x58] sm:$0xff] %v213
    %239 = vst [vmem:[#allocation2 + $0x60] sm:$0xff] %v134
    %240 = vst [vmem:[#allocation2 + $0x68] sm:$0xff] %v175
    %241 = vst [vmem:[#allocation2 + $0x70] sm:$0xff] %v216
    %242 = vst [vmem:[#allocation2 + $0x78] sm:$0xff] %v137
    %243 = vst [vmem:[#allocation2 + $0x80] sm:$0xff] %v178
    %244 = vst [vmem:[#allocation2 + $0x88] sm:$0xff] %v219
    %245 = vst [vmem:[#allocation2 + $0x90] sm:$0xff] %v140
    %246 = vst [vmem:[#allocation2 + $0x98] sm:$0xff] %v181
    %247 = vst [vmem:[#allocation2 + $0xa0] sm:$0xff] %v222
    %248 = vst [vmem:[#allocation2 + $0xa8] sm:$0xff] %v143
    %249 = vst [vmem:[#allocation2 + $0xb0] sm:$0xff] %v184
    %250 = vst [vmem:[#allocation2 + $0xb8] sm:$0xff] %v225
    %p251 = scmp.eq.s32.totalorder 0, 0
    // Predicated region
    $region30: #{tpu_custom_call.1} parent=1 // pred_check
      %p252 = pneg %p251
    $region31: #{tpu_custom_call.1} parent=1 // pred_check_branch
      %254 = sbr.rel (%p252) target = $region33
    $region32: #{tpu_custom_call.1} parent=1 // pred_region
      %255 = vst [vmem:[#allocation8] sm:$0xff] 0.0
    $region33: #{tpu_custom_call.1} parent=1 // pred_fallthru
      _
    %v256 = vld [vmem:[#allocation3] sm:$0xff]
    %v257 = vld [vmem:[#allocation3 + $0x8] sm:$0xff]
    %v258 = vld [vmem:[#allocation3 + $0x10] sm:$0xff]
    %v259 = vld [vmem:[#allocation3 + $0x18] sm:$0xff]
    %v260 = vld [vmem:[#allocation3 + $0x20] sm:$0xff]
    %v261 = vld [vmem:[#allocation3 + $0x28] sm:$0xff]
    %v262 = vld [vmem:[#allocation3 + $0x30] sm:$0xff]
    %v263 = vld [vmem:[#allocation3 + $0x38] sm:$0xff]
    %v264 = vld [vmem:[#allocation3 + $0x40] sm:$0xff]
    %v265 = vld [vmem:[#allocation3 + $0x48] sm:$0xff]
    %v266 = vld [vmem:[#allocation3 + $0x50] sm:$0xff]
    %v267 = vld [vmem:[#allocation3 + $0x58] sm:$0xff]
    %v268 = vld [vmem:[#allocation3 + $0x60] sm:$0xff]
    %v269 = vld [vmem:[#allocation3 + $0x68] sm:$0xff]
    %v270 = vld [vmem:[#allocation3 + $0x70] sm:$0xff]
    %v271 = vld [vmem:[#allocation3 + $0x78] sm:$0xff]
    %v272 = vld [vmem:[#allocation3 + $0x80] sm:$0xff]
    %v273 = vld [vmem:[#allocation3 + $0x88] sm:$0xff]
    %v274 = vld [vmem:[#allocation3 + $0x90] sm:$0xff]
    %v275 = vld [vmem:[#allocation3 + $0x98] sm:$0xff]
    %v276 = vld [vmem:[#allocation3 + $0xa0] sm:$0xff]
    %v277 = vld [vmem:[#allocation3 + $0xa8] sm:$0xff]
    %v278 = vld [vmem:[#allocation3 + $0xb0] sm:$0xff]
    %v279 = vld [vmem:[#allocation3 + $0xb8] sm:$0xff]
    %v280 = vld [vmem:[#allocation3 + $0xc0] sm:$0xff]
    %v281 = vld [vmem:[#allocation3 + $0xc8] sm:$0xff]
    %v282 = vld [vmem:[#allocation3 + $0xd0] sm:$0xff]
    %v283 = vld [vmem:[#allocation3 + $0xd8] sm:$0xff]
    %v284 = vld [vmem:[#allocation3 + $0xe0] sm:$0xff]
    %v285 = vld [vmem:[#allocation3 + $0xe8] sm:$0xff]
    %v286 = vld [vmem:[#allocation3 + $0xf0] sm:$0xff]
    %v287 = vld [vmem:[#allocation3 + $0xf8] sm:$0xff]
    %v288 = vld [vmem:[#allocation3 + $0x100] sm:$0xff]
    %v289 = vld [vmem:[#allocation3 + $0x108] sm:$0xff]
    %v290 = vld [vmem:[#allocation3 + $0x110] sm:$0xff]
    %v291 = vld [vmem:[#allocation3 + $0x118] sm:$0xff]
    %v292 = vld [vmem:[#allocation3 + $0x120] sm:$0xff]
    %v293 = vld [vmem:[#allocation3 + $0x128] sm:$0xff]
    %v294 = vld [vmem:[#allocation3 + $0x130] sm:$0xff]
    %v295 = vld [vmem:[#allocation3 + $0x138] sm:$0xff]
    %v296 = vld [vmem:[#allocation3 + $0x140] sm:$0xff]
    %v297 = vld [vmem:[#allocation3 + $0x148] sm:$0xff]
    %v298 = vld [vmem:[#allocation3 + $0x150] sm:$0xff]
    %v299 = vld [vmem:[#allocation3 + $0x158] sm:$0xff]
    %v300 = vld [vmem:[#allocation3 + $0x160] sm:$0xff]
    %v301 = vld [vmem:[#allocation3 + $0x168] sm:$0xff]
    %v302 = vld [vmem:[#allocation3 + $0x170] sm:$0xff]
    %v303 = vld [vmem:[#allocation3 + $0x178] sm:$0xff]
    %v304 = vld [vmem:[%s4] sm:$0x1]
    %v306 = vperm.slane %v304, 0
    %v308 = vld [vmem:[#allocation8] sm:$0xff]
    %s309 = smul.u32 0, 3
    %s310 = smul.addr %s309, 8
    %s311 = scalar_lea.vmem [#allocation2], %s310
    %v312 = vld [vmem:[%s311] sm:$0xff]
    %v313 = vld [vmem:[%s311 + $0x8] sm:$0xff]
    %v314 = vld [vmem:[%s311 + $0x10] sm:$0xff]
    %315 = vmatpush.msra.mxu0 %v301
    %316 = vmatpush.msra.mxu0 %v298
    %317 = vmatpush.msra.mxu0 %v295
    %318 = vmatpush.msra.mxu0 %v292
    %319 = vmatpush.msra.mxu0 %v289
    %320 = vmatpush.msra.mxu0 %v286
    %321 = vmatpush.msra.mxu0 %v283
    %322 = vmatpush.msra.mxu0 %v280
    %323 = vmatpush.msra.mxu0 %v277
    %324 = vmatpush.msra.mxu0 %v274
    %325 = vmatpush.msra.mxu0 %v271
    %326 = vmatpush.msra.mxu0 %v268
    %327 = vmatpush.msra.mxu0 %v265
    %328 = vmatpush.msra.mxu0 %v262
    %329 = vmatpush.msra.mxu0 %v259
    %330 = vmatpush.msra.mxu0 %v256
    %331 = vmatmul.f32.gmra.mxu0 %v308
    %v332 = vpop.f32.mrf.mxu0
    %v333 = vadd.f32 0.0, %v332
    %334 = vdwg.mxu0
    %335 = vmatpush.msra.mxu0 %v302
    %336 = vmatpush.msra.mxu0 %v299
    %337 = vmatpush.msra.mxu0 %v296
    %338 = vmatpush.msra.mxu0 %v293
    %339 = vmatpush.msra.mxu0 %v290
    %340 = vmatpush.msra.mxu0 %v287
    %341 = vmatpush.msra.mxu0 %v284
    %342 = vmatpush.msra.mxu0 %v281
    %343 = vmatpush.msra.mxu0 %v278
    %344 = vmatpush.msra.mxu0 %v275
    %345 = vmatpush.msra.mxu0 %v272
    %346 = vmatpush.msra.mxu0 %v269
    %347 = vmatpush.msra.mxu0 %v266
    %348 = vmatpush.msra.mxu0 %v263
    %349 = vmatpush.msra.mxu0 %v260
    %350 = vmatpush.msra.mxu0 %v257
    %351 = vmatmul.f32.gmra.mxu0 %v308
    %v352 = vpop.f32.mrf.mxu0
    %v353 = vadd.f32 0.0, %v352
    %354 = vdwg.mxu0
    %355 = vmatpush.msra.mxu0 %v303
    %356 = vmatpush.msra.mxu0 %v300
    %357 = vmatpush.msra.mxu0 %v297
    %358 = vmatpush.msra.mxu0 %v294
    %359 = vmatpush.msra.mxu0 %v291
    %360 = vmatpush.msra.mxu0 %v288
    %361 = vmatpush.msra.mxu0 %v285
    %362 = vmatpush.msra.mxu0 %v282
    %363 = vmatpush.msra.mxu0 %v279
    %364 = vmatpush.msra.mxu0 %v276
    %365 = vmatpush.msra.mxu0 %v273
    %366 = vmatpush.msra.mxu0 %v270
    %367 = vmatpush.msra.mxu0 %v267
    %368 = vmatpush.msra.mxu0 %v264
    %369 = vmatpush.msra.mxu0 %v261
    %370 = vmatpush.msra.mxu0 %v258
    %371 = vmatmul.f32.gmra.mxu0 %v308
    %v372 = vpop.f32.mrf.mxu0
    %v373 = vadd.f32 0.0, %v372
    %374 = vdwg.mxu0
    %v375 = vadd.f32 %v312, %v333
    %v376 = vadd.f32 %v313, %v353
    %v377 = vxor.u32 %v375, 2147483648
    %v378 = vxor.u32 %v376, 2147483648
    %v379 = vmul.f32 %v377, 1.442695
    %v380 = vpow.pop %v379
    %v381 = vmul.f32 %v378, 1.442695
    %v382 = vpow.pop %v381
    %v383 = vadd.f32 %v380, 1.0
    %v384 = vadd.f32 %v382, 1.0
    %v385 = vrcp.pop %v383
    %v386 = vmul.f32 %v383, %v385
    %v387 = vsub.f32 1.0, %v386
    %v388 = vmul.f32 %v385, %v387
    %v389 = vadd.f32 %v385, %v388
    %vm390 = vweird.f32 %v383
    %vm391 = vweird.f32 %v385
    %vm392 = vmor %vm390, %vm391
    %v393 = vsel %vm392, %v385, %v389
    %v394 = vand.u32 2147483647, %v383
    %vm395 = vcmp.eq.f32.partialorder %v394, 8.507059e+37
    %v396 = vand.u32 %v383, 2147483648
    %v397 = vor.u32 1.1754944e-38, %v396
    %v398 = vsel %vm395, %v397, %v393
    %v399 = vmul.f32 1.0, %v398
    %v400 = vrcp.pop %v384
    %v401 = vmul.f32 %v384, %v400
    %v402 = vsub.f32 1.0, %v401
    %v403 = vmul.f32 %v400, %v402
    %v404 = vadd.f32 %v400, %v403
    %vm405 = vweird.f32 %v384
    %vm406 = vweird.f32 %v400
    %vm407 = vmor %vm405, %vm406
    %v408 = vsel %vm407, %v400, %v404
    %v409 = vand.u32 2147483647, %v384
    %vm410 = vcmp.eq.f32.partialorder %v409, 8.507059e+37
    %v411 = vand.u32 %v384, 2147483648
    %v412 = vor.u32 1.1754944e-38, %v411
    %v413 = vsel %vm410, %v412, %v408
    %v414 = vmul.f32 1.0, %v413
    %v415 = vadd.f32 %v373, %v306
    %v416 = vmul.f32 %v399, %v415
    %v417 = vadd.f32 %v314, %v416
    %v418 = vtanh.pop %v417
    %v419 = vsub.f32 1.0, %v414
    %v420 = vmul.f32 %v419, %v418
    %v421 = vmul.f32 %v414, %v308
    %v422 = vadd.f32 %v420, %v421
    %s423 = smul.u32 1, 3
    %s424 = smul.addr %s423, 8
    %s425 = scalar_lea.vmem [#allocation2], %s424
    %v426 = vld [vmem:[%s425] sm:$0xff]
    %v427 = vld [vmem:[%s425 + $0x8] sm:$0xff]
    %v428 = vld [vmem:[%s425 + $0x10] sm:$0xff]
    %429 = vmatpush.msra.mxu0 %v301
    %430 = vmatpush.msra.mxu0 %v298
    %431 = vmatpush.msra.mxu0 %v295
    %432 = vmatpush.msra.mxu0 %v292
    %433 = vmatpush.msra.mxu0 %v289
    %434 = vmatpush.msra.mxu0 %v286
    %435 = vmatpush.msra.mxu0 %v283
    %436 = vmatpush.msra.mxu0 %v280
    %437 = vmatpush.msra.mxu0 %v277
    %438 = vmatpush.msra.mxu0 %v274
    %439 = vmatpush.msra.mxu0 %v271
    %440 = vmatpush.msra.mxu0 %v268
    %441 = vmatpush.msra.mxu0 %v265
    %442 = vmatpush.msra.mxu0 %v262
    %443 = vmatpush.msra.mxu0 %v259
    %444 = vmatpush.msra.mxu0 %v256
    %445 = vmatmul.f32.gmra.mxu0 %v422
    %v446 = vpop.f32.mrf.mxu0
    %v447 = vadd.f32 0.0, %v446
    %448 = vdwg.mxu0
    %449 = vmatpush.msra.mxu0 %v302
    %450 = vmatpush.msra.mxu0 %v299
    %451 = vmatpush.msra.mxu0 %v296
    %452 = vmatpush.msra.mxu0 %v293
    %453 = vmatpush.msra.mxu0 %v290
    %454 = vmatpush.msra.mxu0 %v287
    %455 = vmatpush.msra.mxu0 %v284
    %456 = vmatpush.msra.mxu0 %v281
    %457 = vmatpush.msra.mxu0 %v278
    %458 = vmatpush.msra.mxu0 %v275
    %459 = vmatpush.msra.mxu0 %v272
    %460 = vmatpush.msra.mxu0 %v269
    %461 = vmatpush.msra.mxu0 %v266
    %462 = vmatpush.msra.mxu0 %v263
    %463 = vmatpush.msra.mxu0 %v260
    %464 = vmatpush.msra.mxu0 %v257
    %465 = vmatmul.f32.gmra.mxu0 %v422
    %v466 = vpop.f32.mrf.mxu0
    %v467 = vadd.f32 0.0, %v466
    %468 = vdwg.mxu0
    %469 = vmatpush.msra.mxu0 %v303
    %470 = vmatpush.msra.mxu0 %v300
    %471 = vmatpush.msra.mxu0 %v297
    %472 = vmatpush.msra.mxu0 %v294
    %473 = vmatpush.msra.mxu0 %v291
    %474 = vmatpush.msra.mxu0 %v288
    %475 = vmatpush.msra.mxu0 %v285
    %476 = vmatpush.msra.mxu0 %v282
    %477 = vmatpush.msra.mxu0 %v279
    %478 = vmatpush.msra.mxu0 %v276
    %479 = vmatpush.msra.mxu0 %v273
    %480 = vmatpush.msra.mxu0 %v270
    %481 = vmatpush.msra.mxu0 %v267
    %482 = vmatpush.msra.mxu0 %v264
    %483 = vmatpush.msra.mxu0 %v261
    %484 = vmatpush.msra.mxu0 %v258
    %485 = vmatmul.f32.gmra.mxu0 %v422
    %v486 = vpop.f32.mrf.mxu0
    %v487 = vadd.f32 0.0, %v486
    %488 = vdwg.mxu0
    %v489 = vadd.f32 %v426, %v447
    %v490 = vadd.f32 %v427, %v467
    %v491 = vxor.u32 %v489, 2147483648
    %v492 = vxor.u32 %v490, 2147483648
    %v493 = vmul.f32 %v491, 1.442695
    %v494 = vpow.pop %v493
    %v495 = vmul.f32 %v492, 1.442695
    %v496 = vpow.pop %v495
    %v497 = vadd.f32 %v494, 1.0
    %v498 = vadd.f32 %v496, 1.0
    %v499 = vrcp.pop %v497
    %v500 = vmul.f32 %v497, %v499
    %v501 = vsub.f32 1.0, %v500
    %v502 = vmul.f32 %v499, %v501
    %v503 = vadd.f32 %v499, %v502
    %vm504 = vweird.f32 %v497
    %vm505 = vweird.f32 %v499
    %vm506 = vmor %vm504, %vm505
    %v507 = vsel %vm506, %v499, %v503
    %v508 = vand.u32 2147483647, %v497
    %vm509 = vcmp.eq.f32.partialorder %v508, 8.507059e+37
    %v510 = vand.u32 %v497, 2147483648
    %v511 = vor.u32 1.1754944e-38, %v510
    %v512 = vsel %vm509, %v511, %v507
    %v513 = vmul.f32 1.0, %v512
    %v514 = vrcp.pop %v498
    %v515 = vmul.f32 %v498, %v514
    %v516 = vsub.f32 1.0, %v515
    %v517 = vmul.f32 %v514, %v516
    %v518 = vadd.f32 %v514, %v517
    %vm519 = vweird.f32 %v498
    %vm520 = vweird.f32 %v514
    %vm521 = vmor %vm519, %vm520
    %v522 = vsel %vm521, %v514, %v518
    %v523 = vand.u32 2147483647, %v498
    %vm524 = vcmp.eq.f32.partialorder %v523, 8.507059e+37
    %v525 = vand.u32 %v498, 2147483648
    %v526 = vor.u32 1.1754944e-38, %v525
    %v527 = vsel %vm524, %v526, %v522
    %v528 = vmul.f32 1.0, %v527
    %v529 = vadd.f32 %v487, %v306
    %v530 = vmul.f32 %v513, %v529
    %v531 = vadd.f32 %v428, %v530
    %v532 = vtanh.pop %v531
    %v533 = vsub.f32 1.0, %v528
    %v534 = vmul.f32 %v533, %v532
    %v535 = vmul.f32 %v528, %v422
    %v536 = vadd.f32 %v534, %v535
    %s537 = smul.u32 2, 3
    %s538 = smul.addr %s537, 8
    %s539 = scalar_lea.vmem [#allocation2], %s538
    %v540 = vld [vmem:[%s539] sm:$0xff]
    %v541 = vld [vmem:[%s539 + $0x8] sm:$0xff]
    %v542 = vld [vmem:[%s539 + $0x10] sm:$0xff]
    %543 = vmatpush.msra.mxu0 %v301
    %544 = vmatpush.msra.mxu0 %v298
    %545 = vmatpush.msra.mxu0 %v295
    %546 = vmatpush.msra.mxu0 %v292
    %547 = vmatpush.msra.mxu0 %v289
    %548 = vmatpush.msra.mxu0 %v286
    %549 = vmatpush.msra.mxu0 %v283
    %550 = vmatpush.msra.mxu0 %v280
    %551 = vmatpush.msra.mxu0 %v277
    %552 = vmatpush.msra.mxu0 %v274
    %553 = vmatpush.msra.mxu0 %v271
    %554 = vmatpush.msra.mxu0 %v268
    %555 = vmatpush.msra.mxu0 %v265
    %556 = vmatpush.msra.mxu0 %v262
    %557 = vmatpush.msra.mxu0 %v259
    %558 = vmatpush.msra.mxu0 %v256
    %559 = vmatmul.f32.gmra.mxu0 %v536
    %v560 = vpop.f32.mrf.mxu0
    %v561 = vadd.f32 0.0, %v560
    %562 = vdwg.mxu0
    %563 = vmatpush.msra.mxu0 %v302
    %564 = vmatpush.msra.mxu0 %v299
    %565 = vmatpush.msra.mxu0 %v296
    %566 = vmatpush.msra.mxu0 %v293
    %567 = vmatpush.msra.mxu0 %v290
    %568 = vmatpush.msra.mxu0 %v287
    %569 = vmatpush.msra.mxu0 %v284
    %570 = vmatpush.msra.mxu0 %v281
    %571 = vmatpush.msra.mxu0 %v278
    %572 = vmatpush.msra.mxu0 %v275
    %573 = vmatpush.msra.mxu0 %v272
    %574 = vmatpush.msra.mxu0 %v269
    %575 = vmatpush.msra.mxu0 %v266
    %576 = vmatpush.msra.mxu0 %v263
    %577 = vmatpush.msra.mxu0 %v260
    %578 = vmatpush.msra.mxu0 %v257
    %579 = vmatmul.f32.gmra.mxu0 %v536
    %v580 = vpop.f32.mrf.mxu0
    %v581 = vadd.f32 0.0, %v580
    %582 = vdwg.mxu0
    %583 = vmatpush.msra.mxu0 %v303
    %584 = vmatpush.msra.mxu0 %v300
    %585 = vmatpush.msra.mxu0 %v297
    %586 = vmatpush.msra.mxu0 %v294
    %587 = vmatpush.msra.mxu0 %v291
    %588 = vmatpush.msra.mxu0 %v288
    %589 = vmatpush.msra.mxu0 %v285
    %590 = vmatpush.msra.mxu0 %v282
    %591 = vmatpush.msra.mxu0 %v279
    %592 = vmatpush.msra.mxu0 %v276
    %593 = vmatpush.msra.mxu0 %v273
    %594 = vmatpush.msra.mxu0 %v270
    %595 = vmatpush.msra.mxu0 %v267
    %596 = vmatpush.msra.mxu0 %v264
    %597 = vmatpush.msra.mxu0 %v261
    %598 = vmatpush.msra.mxu0 %v258
    %599 = vmatmul.f32.gmra.mxu0 %v536
    %v600 = vpop.f32.mrf.mxu0
    %v601 = vadd.f32 0.0, %v600
    %602 = vdwg.mxu0
    %v603 = vadd.f32 %v540, %v561
    %v604 = vadd.f32 %v541, %v581
    %v605 = vxor.u32 %v603, 2147483648
    %v606 = vxor.u32 %v604, 2147483648
    %v607 = vmul.f32 %v605, 1.442695
    %v608 = vpow.pop %v607
    %v609 = vmul.f32 %v606, 1.442695
    %v610 = vpow.pop %v609
    %v611 = vadd.f32 %v608, 1.0
    %v612 = vadd.f32 %v610, 1.0
    %v613 = vrcp.pop %v611
    %v614 = vmul.f32 %v611, %v613
    %v615 = vsub.f32 1.0, %v614
    %v616 = vmul.f32 %v613, %v615
    %v617 = vadd.f32 %v613, %v616
    %vm618 = vweird.f32 %v611
    %vm619 = vweird.f32 %v613
    %vm620 = vmor %vm618, %vm619
    %v621 = vsel %vm620, %v613, %v617
    %v622 = vand.u32 2147483647, %v611
    %vm623 = vcmp.eq.f32.partialorder %v622, 8.507059e+37
    %v624 = vand.u32 %v611, 2147483648
    %v625 = vor.u32 1.1754944e-38, %v624
    %v626 = vsel %vm623, %v625, %v621
    %v627 = vmul.f32 1.0, %v626
    %v628 = vrcp.pop %v612
    %v629 = vmul.f32 %v612, %v628
    %v630 = vsub.f32 1.0, %v629
    %v631 = vmul.f32 %v628, %v630
    %v632 = vadd.f32 %v628, %v631
    %vm633 = vweird.f32 %v612
    %vm634 = vweird.f32 %v628
    %vm635 = vmor %vm633, %vm634
    %v636 = vsel %vm635, %v628, %v632
    %v637 = vand.u32 2147483647, %v612
    %vm638 = vcmp.eq.f32.partialorder %v637, 8.507059e+37
    %v639 = vand.u32 %v612, 2147483648
    %v640 = vor.u32 1.1754944e-38, %v639
    %v641 = vsel %vm638, %v640, %v636
    %v642 = vmul.f32 1.0, %v641
    %v643 = vadd.f32 %v601, %v306
    %v644 = vmul.f32 %v627, %v643
    %v645 = vadd.f32 %v542, %v644
    %v646 = vtanh.pop %v645
    %v647 = vsub.f32 1.0, %v642
    %v648 = vmul.f32 %v647, %v646
    %v649 = vmul.f32 %v642, %v536
    %v650 = vadd.f32 %v648, %v649
    %s651 = smul.u32 3, 3
    %s652 = smul.addr %s651, 8
    %s653 = scalar_lea.vmem [#allocation2], %s652
    %v654 = vld [vmem:[%s653] sm:$0xff]
    %v655 = vld [vmem:[%s653 + $0x8] sm:$0xff]
    %v656 = vld [vmem:[%s653 + $0x10] sm:$0xff]
    %657 = vmatpush.msra.mxu0 %v301
    %658 = vmatpush.msra.mxu0 %v298
    %659 = vmatpush.msra.mxu0 %v295
    %660 = vmatpush.msra.mxu0 %v292
    %661 = vmatpush.msra.mxu0 %v289
    %662 = vmatpush.msra.mxu0 %v286
    %663 = vmatpush.msra.mxu0 %v283
    %664 = vmatpush.msra.mxu0 %v280
    %665 = vmatpush.msra.mxu0 %v277
    %666 = vmatpush.msra.mxu0 %v274
    %667 = vmatpush.msra.mxu0 %v271
    %668 = vmatpush.msra.mxu0 %v268
    %669 = vmatpush.msra.mxu0 %v265
    %670 = vmatpush.msra.mxu0 %v262
    %671 = vmatpush.msra.mxu0 %v259
    %672 = vmatpush.msra.mxu0 %v256
    %673 = vmatmul.f32.gmra.mxu0 %v650
    %v674 = vpop.f32.mrf.mxu0
    %v675 = vadd.f32 0.0, %v674
    %676 = vdwg.mxu0
    %677 = vmatpush.msra.mxu0 %v302
    %678 = vmatpush.msra.mxu0 %v299
    %679 = vmatpush.msra.mxu0 %v296
    %680 = vmatpush.msra.mxu0 %v293
    %681 = vmatpush.msra.mxu0 %v290
    %682 = vmatpush.msra.mxu0 %v287
    %683 = vmatpush.msra.mxu0 %v284
    %684 = vmatpush.msra.mxu0 %v281
    %685 = vmatpush.msra.mxu0 %v278
    %686 = vmatpush.msra.mxu0 %v275
    %687 = vmatpush.msra.mxu0 %v272
    %688 = vmatpush.msra.mxu0 %v269
    %689 = vmatpush.msra.mxu0 %v266
    %690 = vmatpush.msra.mxu0 %v263
    %691 = vmatpush.msra.mxu0 %v260
    %692 = vmatpush.msra.mxu0 %v257
    %693 = vmatmul.f32.gmra.mxu0 %v650
    %v694 = vpop.f32.mrf.mxu0
    %v695 = vadd.f32 0.0, %v694
    %696 = vdwg.mxu0
    %697 = vmatpush.msra.mxu0 %v303
    %698 = vmatpush.msra.mxu0 %v300
    %699 = vmatpush.msra.mxu0 %v297
    %700 = vmatpush.msra.mxu0 %v294
    %701 = vmatpush.msra.mxu0 %v291
    %702 = vmatpush.msra.mxu0 %v288
    %703 = vmatpush.msra.mxu0 %v285
    %704 = vmatpush.msra.mxu0 %v282
    %705 = vmatpush.msra.mxu0 %v279
    %706 = vmatpush.msra.mxu0 %v276
    %707 = vmatpush.msra.mxu0 %v273
    %708 = vmatpush.msra.mxu0 %v270
    %709 = vmatpush.msra.mxu0 %v267
    %710 = vmatpush.msra.mxu0 %v264
    %711 = vmatpush.msra.mxu0 %v261
    %712 = vmatpush.msra.mxu0 %v258
    %713 = vmatmul.f32.gmra.mxu0 %v650
    %v714 = vpop.f32.mrf.mxu0
    %v715 = vadd.f32 0.0, %v714
    %716 = vdwg.mxu0
    %v717 = vadd.f32 %v654, %v675
    %v718 = vadd.f32 %v655, %v695
    %v719 = vxor.u32 %v717, 2147483648
    %v720 = vxor.u32 %v718, 2147483648
    %v721 = vmul.f32 %v719, 1.442695
    %v722 = vpow.pop %v721
    %v723 = vmul.f32 %v720, 1.442695
    %v724 = vpow.pop %v723
    %v725 = vadd.f32 %v722, 1.0
    %v726 = vadd.f32 %v724, 1.0
    %v727 = vrcp.pop %v725
    %v728 = vmul.f32 %v725, %v727
    %v729 = vsub.f32 1.0, %v728
    %v730 = vmul.f32 %v727, %v729
    %v731 = vadd.f32 %v727, %v730
    %vm732 = vweird.f32 %v725
    %vm733 = vweird.f32 %v727
    %vm734 = vmor %vm732, %vm733
    %v735 = vsel %vm734, %v727, %v731
    %v736 = vand.u32 2147483647, %v725
    %vm737 = vcmp.eq.f32.partialorder %v736, 8.507059e+37
    %v738 = vand.u32 %v725, 2147483648
    %v739 = vor.u32 1.1754944e-38, %v738
    %v740 = vsel %vm737, %v739, %v735
    %v741 = vmul.f32 1.0, %v740
    %v742 = vrcp.pop %v726
    %v743 = vmul.f32 %v726, %v742
    %v744 = vsub.f32 1.0, %v743
    %v745 = vmul.f32 %v742, %v744
    %v746 = vadd.f32 %v742, %v745
    %vm747 = vweird.f32 %v726
    %vm748 = vweird.f32 %v742
    %vm749 = vmor %vm747, %vm748
    %v750 = vsel %vm749, %v742, %v746
    %v751 = vand.u32 2147483647, %v726
    %vm752 = vcmp.eq.f32.partialorder %v751, 8.507059e+37
    %v753 = vand.u32 %v726, 2147483648
    %v754 = vor.u32 1.1754944e-38, %v753
    %v755 = vsel %vm752, %v754, %v750
    %v756 = vmul.f32 1.0, %v755
    %v757 = vadd.f32 %v715, %v306
    %v758 = vmul.f32 %v741, %v757
    %v759 = vadd.f32 %v656, %v758
    %v760 = vtanh.pop %v759
    %v761 = vsub.f32 1.0, %v756
    %v762 = vmul.f32 %v761, %v760
    %v763 = vmul.f32 %v756, %v650
    %v764 = vadd.f32 %v762, %v763
    %s765 = smul.u32 4, 3
    %s766 = smul.addr %s765, 8
    %s767 = scalar_lea.vmem [#allocation2], %s766
    %v768 = vld [vmem:[%s767] sm:$0xff]
    %v769 = vld [vmem:[%s767 + $0x8] sm:$0xff]
    %v770 = vld [vmem:[%s767 + $0x10] sm:$0xff]
    %771 = vmatpush.msra.mxu0 %v301
    %772 = vmatpush.msra.mxu0 %v298
    %773 = vmatpush.msra.mxu0 %v295
    %774 = vmatpush.msra.mxu0 %v292
    %775 = vmatpush.msra.mxu0 %v289
    %776 = vmatpush.msra.mxu0 %v286
    %777 = vmatpush.msra.mxu0 %v283
    %778 = vmatpush.msra.mxu0 %v280
    %779 = vmatpush.msra.mxu0 %v277
    %780 = vmatpush.msra.mxu0 %v274
    %781 = vmatpush.msra.mxu0 %v271
    %782 = vmatpush.msra.mxu0 %v268
    %783 = vmatpush.msra.mxu0 %v265
    %784 = vmatpush.msra.mxu0 %v262
    %785 = vmatpush.msra.mxu0 %v259
    %786 = vmatpush.msra.mxu0 %v256
    %787 = vmatmul.f32.gmra.mxu0 %v764
    %v788 = vpop.f32.mrf.mxu0
    %v789 = vadd.f32 0.0, %v788
    %790 = vdwg.mxu0
    %791 = vmatpush.msra.mxu0 %v302
    %792 = vmatpush.msra.mxu0 %v299
    %793 = vmatpush.msra.mxu0 %v296
    %794 = vmatpush.msra.mxu0 %v293
    %795 = vmatpush.msra.mxu0 %v290
    %796 = vmatpush.msra.mxu0 %v287
    %797 = vmatpush.msra.mxu0 %v284
    %798 = vmatpush.msra.mxu0 %v281
    %799 = vmatpush.msra.mxu0 %v278
    %800 = vmatpush.msra.mxu0 %v275
    %801 = vmatpush.msra.mxu0 %v272
    %802 = vmatpush.msra.mxu0 %v269
    %803 = vmatpush.msra.mxu0 %v266
    %804 = vmatpush.msra.mxu0 %v263
    %805 = vmatpush.msra.mxu0 %v260
    %806 = vmatpush.msra.mxu0 %v257
    %807 = vmatmul.f32.gmra.mxu0 %v764
    %v808 = vpop.f32.mrf.mxu0
    %v809 = vadd.f32 0.0, %v808
    %810 = vdwg.mxu0
    %811 = vmatpush.msra.mxu0 %v303
    %812 = vmatpush.msra.mxu0 %v300
    %813 = vmatpush.msra.mxu0 %v297
    %814 = vmatpush.msra.mxu0 %v294
    %815 = vmatpush.msra.mxu0 %v291
    %816 = vmatpush.msra.mxu0 %v288
    %817 = vmatpush.msra.mxu0 %v285
    %818 = vmatpush.msra.mxu0 %v282
    %819 = vmatpush.msra.mxu0 %v279
    %820 = vmatpush.msra.mxu0 %v276
    %821 = vmatpush.msra.mxu0 %v273
    %822 = vmatpush.msra.mxu0 %v270
    %823 = vmatpush.msra.mxu0 %v267
    %824 = vmatpush.msra.mxu0 %v264
    %825 = vmatpush.msra.mxu0 %v261
    %826 = vmatpush.msra.mxu0 %v258
    %827 = vmatmul.f32.gmra.mxu0 %v764
    %v828 = vpop.f32.mrf.mxu0
    %v829 = vadd.f32 0.0, %v828
    %830 = vdwg.mxu0
    %v831 = vadd.f32 %v768, %v789
    %v832 = vadd.f32 %v769, %v809
    %v833 = vxor.u32 %v831, 2147483648
    %v834 = vxor.u32 %v832, 2147483648
    %v835 = vmul.f32 %v833, 1.442695
    %v836 = vpow.pop %v835
    %v837 = vmul.f32 %v834, 1.442695
    %v838 = vpow.pop %v837
    %v839 = vadd.f32 %v836, 1.0
    %v840 = vadd.f32 %v838, 1.0
    %v841 = vrcp.pop %v839
    %v842 = vmul.f32 %v839, %v841
    %v843 = vsub.f32 1.0, %v842
    %v844 = vmul.f32 %v841, %v843
    %v845 = vadd.f32 %v841, %v844
    %vm846 = vweird.f32 %v839
    %vm847 = vweird.f32 %v841
    %vm848 = vmor %vm846, %vm847
    %v849 = vsel %vm848, %v841, %v845
    %v850 = vand.u32 2147483647, %v839
    %vm851 = vcmp.eq.f32.partialorder %v850, 8.507059e+37
    %v852 = vand.u32 %v839, 2147483648
    %v853 = vor.u32 1.1754944e-38, %v852
    %v854 = vsel %vm851, %v853, %v849
    %v855 = vmul.f32 1.0, %v854
    %v856 = vrcp.pop %v840
    %v857 = vmul.f32 %v840, %v856
    %v858 = vsub.f32 1.0, %v857
    %v859 = vmul.f32 %v856, %v858
    %v860 = vadd.f32 %v856, %v859
    %vm861 = vweird.f32 %v840
    %vm862 = vweird.f32 %v856
    %vm863 = vmor %vm861, %vm862
    %v864 = vsel %vm863, %v856, %v860
    %v865 = vand.u32 2147483647, %v840
    %vm866 = vcmp.eq.f32.partialorder %v865, 8.507059e+37
    %v867 = vand.u32 %v840, 2147483648
    %v868 = vor.u32 1.1754944e-38, %v867
    %v869 = vsel %vm866, %v868, %v864
    %v870 = vmul.f32 1.0, %v869
    %v871 = vadd.f32 %v829, %v306
    %v872 = vmul.f32 %v855, %v871
    %v873 = vadd.f32 %v770, %v872
    %v874 = vtanh.pop %v873
    %v875 = vsub.f32 1.0, %v870
    %v876 = vmul.f32 %v875, %v874
    %v877 = vmul.f32 %v870, %v764
    %v878 = vadd.f32 %v876, %v877
    %s879 = smul.u32 5, 3
    %s880 = smul.addr %s879, 8
    %s881 = scalar_lea.vmem [#allocation2], %s880
    %v882 = vld [vmem:[%s881] sm:$0xff]
    %v883 = vld [vmem:[%s881 + $0x8] sm:$0xff]
    %v884 = vld [vmem:[%s881 + $0x10] sm:$0xff]
    %885 = vmatpush.msra.mxu0 %v301
    %886 = vmatpush.msra.mxu0 %v298
    %887 = vmatpush.msra.mxu0 %v295
    %888 = vmatpush.msra.mxu0 %v292
    %889 = vmatpush.msra.mxu0 %v289
    %890 = vmatpush.msra.mxu0 %v286
    %891 = vmatpush.msra.mxu0 %v283
    %892 = vmatpush.msra.mxu0 %v280
    %893 = vmatpush.msra.mxu0 %v277
    %894 = vmatpush.msra.mxu0 %v274
    %895 = vmatpush.msra.mxu0 %v271
    %896 = vmatpush.msra.mxu0 %v268
    %897 = vmatpush.msra.mxu0 %v265
    %898 = vmatpush.msra.mxu0 %v262
    %899 = vmatpush.msra.mxu0 %v259
    %900 = vmatpush.msra.mxu0 %v256
    %901 = vmatmul.f32.gmra.mxu0 %v878
    %v902 = vpop.f32.mrf.mxu0
    %v903 = vadd.f32 0.0, %v902
    %904 = vdwg.mxu0
    %905 = vmatpush.msra.mxu0 %v302
    %906 = vmatpush.msra.mxu0 %v299
    %907 = vmatpush.msra.mxu0 %v296
    %908 = vmatpush.msra.mxu0 %v293
    %909 = vmatpush.msra.mxu0 %v290
    %910 = vmatpush.msra.mxu0 %v287
    %911 = vmatpush.msra.mxu0 %v284
    %912 = vmatpush.msra.mxu0 %v281
    %913 = vmatpush.msra.mxu0 %v278
    %914 = vmatpush.msra.mxu0 %v275
    %915 = vmatpush.msra.mxu0 %v272
    %916 = vmatpush.msra.mxu0 %v269
    %917 = vmatpush.msra.mxu0 %v266
    %918 = vmatpush.msra.mxu0 %v263
    %919 = vmatpush.msra.mxu0 %v260
    %920 = vmatpush.msra.mxu0 %v257
    %921 = vmatmul.f32.gmra.mxu0 %v878
    %v922 = vpop.f32.mrf.mxu0
    %v923 = vadd.f32 0.0, %v922
    %924 = vdwg.mxu0
    %925 = vmatpush.msra.mxu0 %v303
    %926 = vmatpush.msra.mxu0 %v300
    %927 = vmatpush.msra.mxu0 %v297
    %928 = vmatpush.msra.mxu0 %v294
    %929 = vmatpush.msra.mxu0 %v291
    %930 = vmatpush.msra.mxu0 %v288
    %931 = vmatpush.msra.mxu0 %v285
    %932 = vmatpush.msra.mxu0 %v282
    %933 = vmatpush.msra.mxu0 %v279
    %934 = vmatpush.msra.mxu0 %v276
    %935 = vmatpush.msra.mxu0 %v273
    %936 = vmatpush.msra.mxu0 %v270
    %937 = vmatpush.msra.mxu0 %v267
    %938 = vmatpush.msra.mxu0 %v264
    %939 = vmatpush.msra.mxu0 %v261
    %940 = vmatpush.msra.mxu0 %v258
    %941 = vmatmul.f32.gmra.mxu0 %v878
    %v942 = vpop.f32.mrf.mxu0
    %v943 = vadd.f32 0.0, %v942
    %944 = vdwg.mxu0
    %v945 = vadd.f32 %v882, %v903
    %v946 = vadd.f32 %v883, %v923
    %v947 = vxor.u32 %v945, 2147483648
    %v948 = vxor.u32 %v946, 2147483648
    %v949 = vmul.f32 %v947, 1.442695
    %v950 = vpow.pop %v949
    %v951 = vmul.f32 %v948, 1.442695
    %v952 = vpow.pop %v951
    %v953 = vadd.f32 %v950, 1.0
    %v954 = vadd.f32 %v952, 1.0
    %v955 = vrcp.pop %v953
    %v956 = vmul.f32 %v953, %v955
    %v957 = vsub.f32 1.0, %v956
    %v958 = vmul.f32 %v955, %v957
    %v959 = vadd.f32 %v955, %v958
    %vm960 = vweird.f32 %v953
    %vm961 = vweird.f32 %v955
    %vm962 = vmor %vm960, %vm961
    %v963 = vsel %vm962, %v955, %v959
    %v964 = vand.u32 2147483647, %v953
    %vm965 = vcmp.eq.f32.partialorder %v964, 8.507059e+37
    %v966 = vand.u32 %v953, 2147483648
    %v967 = vor.u32 1.1754944e-38, %v966
    %v968 = vsel %vm965, %v967, %v963
    %v969 = vmul.f32 1.0, %v968
    %v970 = vrcp.pop %v954
    %v971 = vmul.f32 %v954, %v970
    %v972 = vsub.f32 1.0, %v971
    %v973 = vmul.f32 %v970, %v972
    %v974 = vadd.f32 %v970, %v973
    %vm975 = vweird.f32 %v954
    %vm976 = vweird.f32 %v970
    %vm977 = vmor %vm975, %vm976
    %v978 = vsel %vm977, %v970, %v974
    %v979 = vand.u32 2147483647, %v954
    %vm980 = vcmp.eq.f32.partialorder %v979, 8.507059e+37
    %v981 = vand.u32 %v954, 2147483648
    %v982 = vor.u32 1.1754944e-38, %v981
    %v983 = vsel %vm980, %v982, %v978
    %v984 = vmul.f32 1.0, %v983
    %v985 = vadd.f32 %v943, %v306
    %v986 = vmul.f32 %v969, %v985
    %v987 = vadd.f32 %v884, %v986
    %v988 = vtanh.pop %v987
    %v989 = vsub.f32 1.0, %v984
    %v990 = vmul.f32 %v989, %v988
    %v991 = vmul.f32 %v984, %v878
    %v992 = vadd.f32 %v990, %v991
    %s993 = smul.u32 6, 3
    %s994 = smul.addr %s993, 8
    %s995 = scalar_lea.vmem [#allocation2], %s994
    %v996 = vld [vmem:[%s995] sm:$0xff]
    %v997 = vld [vmem:[%s995 + $0x8] sm:$0xff]
    %v998 = vld [vmem:[%s995 + $0x10] sm:$0xff]
    %999 = vmatpush.msra.mxu0 %v301
    %1000 = vmatpush.msra.mxu0 %v298
    %1001 = vmatpush.msra.mxu0 %v295
    %1002 = vmatpush.msra.mxu0 %v292
    %1003 = vmatpush.msra.mxu0 %v289
    %1004 = vmatpush.msra.mxu0 %v286
    %1005 = vmatpush.msra.mxu0 %v283
    %1006 = vmatpush.msra.mxu0 %v280
    %1007 = vmatpush.msra.mxu0 %v277
    %1008 = vmatpush.msra.mxu0 %v274
    %1009 = vmatpush.msra.mxu0 %v271
    %1010 = vmatpush.msra.mxu0 %v268
    %1011 = vmatpush.msra.mxu0 %v265
    %1012 = vmatpush.msra.mxu0 %v262
    %1013 = vmatpush.msra.mxu0 %v259
    %1014 = vmatpush.msra.mxu0 %v256
    %1015 = vmatmul.f32.gmra.mxu0 %v992
    %v1016 = vpop.f32.mrf.mxu0
    %v1017 = vadd.f32 0.0, %v1016
    %1018 = vdwg.mxu0
    %1019 = vmatpush.msra.mxu0 %v302
    %1020 = vmatpush.msra.mxu0 %v299
    %1021 = vmatpush.msra.mxu0 %v296
    %1022 = vmatpush.msra.mxu0 %v293
    %1023 = vmatpush.msra.mxu0 %v290
    %1024 = vmatpush.msra.mxu0 %v287
    %1025 = vmatpush.msra.mxu0 %v284
    %1026 = vmatpush.msra.mxu0 %v281
    %1027 = vmatpush.msra.mxu0 %v278
    %1028 = vmatpush.msra.mxu0 %v275
    %1029 = vmatpush.msra.mxu0 %v272
    %1030 = vmatpush.msra.mxu0 %v269
    %1031 = vmatpush.msra.mxu0 %v266
    %1032 = vmatpush.msra.mxu0 %v263
    %1033 = vmatpush.msra.mxu0 %v260
    %1034 = vmatpush.msra.mxu0 %v257
    %1035 = vmatmul.f32.gmra.mxu0 %v992
    %v1036 = vpop.f32.mrf.mxu0
    %v1037 = vadd.f32 0.0, %v1036
    %1038 = vdwg.mxu0
    %1039 = vmatpush.msra.mxu0 %v303
    %1040 = vmatpush.msra.mxu0 %v300
    %1041 = vmatpush.msra.mxu0 %v297
    %1042 = vmatpush.msra.mxu0 %v294
    %1043 = vmatpush.msra.mxu0 %v291
    %1044 = vmatpush.msra.mxu0 %v288
    %1045 = vmatpush.msra.mxu0 %v285
    %1046 = vmatpush.msra.mxu0 %v282
    %1047 = vmatpush.msra.mxu0 %v279
    %1048 = vmatpush.msra.mxu0 %v276
    %1049 = vmatpush.msra.mxu0 %v273
    %1050 = vmatpush.msra.mxu0 %v270
    %1051 = vmatpush.msra.mxu0 %v267
    %1052 = vmatpush.msra.mxu0 %v264
    %1053 = vmatpush.msra.mxu0 %v261
    %1054 = vmatpush.msra.mxu0 %v258
    %1055 = vmatmul.f32.gmra.mxu0 %v992
    %v1056 = vpop.f32.mrf.mxu0
    %v1057 = vadd.f32 0.0, %v1056
    %1058 = vdwg.mxu0
    %v1059 = vadd.f32 %v996, %v1017
    %v1060 = vadd.f32 %v997, %v1037
    %v1061 = vxor.u32 %v1059, 2147483648
    %v1062 = vxor.u32 %v1060, 2147483648
    %v1063 = vmul.f32 %v1061, 1.442695
    %v1064 = vpow.pop %v1063
    %v1065 = vmul.f32 %v1062, 1.442695
    %v1066 = vpow.pop %v1065
    %v1067 = vadd.f32 %v1064, 1.0
    %v1068 = vadd.f32 %v1066, 1.0
    %v1069 = vrcp.pop %v1067
    %v1070 = vmul.f32 %v1067, %v1069
    %v1071 = vsub.f32 1.0, %v1070
    %v1072 = vmul.f32 %v1069, %v1071
    %v1073 = vadd.f32 %v1069, %v1072
    %vm1074 = vweird.f32 %v1067
    %vm1075 = vweird.f32 %v1069
    %vm1076 = vmor %vm1074, %vm1075
    %v1077 = vsel %vm1076, %v1069, %v1073
    %v1078 = vand.u32 2147483647, %v1067
    %vm1079 = vcmp.eq.f32.partialorder %v1078, 8.507059e+37
    %v1080 = vand.u32 %v1067, 2147483648
    %v1081 = vor.u32 1.1754944e-38, %v1080
    %v1082 = vsel %vm1079, %v1081, %v1077
    %v1083 = vmul.f32 1.0, %v1082
    %v1084 = vrcp.pop %v1068
    %v1085 = vmul.f32 %v1068, %v1084
    %v1086 = vsub.f32 1.0, %v1085
    %v1087 = vmul.f32 %v1084, %v1086
    %v1088 = vadd.f32 %v1084, %v1087
    %vm1089 = vweird.f32 %v1068
    %vm1090 = vweird.f32 %v1084
    %vm1091 = vmor %vm1089, %vm1090
    %v1092 = vsel %vm1091, %v1084, %v1088
    %v1093 = vand.u32 2147483647, %v1068
    %vm1094 = vcmp.eq.f32.partialorder %v1093, 8.507059e+37
    %v1095 = vand.u32 %v1068, 2147483648
    %v1096 = vor.u32 1.1754944e-38, %v1095
    %v1097 = vsel %vm1094, %v1096, %v1092
    %v1098 = vmul.f32 1.0, %v1097
    %v1099 = vadd.f32 %v1057, %v306
    %v1100 = vmul.f32 %v1083, %v1099
    %v1101 = vadd.f32 %v998, %v1100
    %v1102 = vtanh.pop %v1101
    %v1103 = vsub.f32 1.0, %v1098
    %v1104 = vmul.f32 %v1103, %v1102
    %v1105 = vmul.f32 %v1098, %v992
    %v1106 = vadd.f32 %v1104, %v1105
    %s1107 = smul.u32 7, 3
    %s1108 = smul.addr %s1107, 8
    %s1109 = scalar_lea.vmem [#allocation2], %s1108
    %v1110 = vld [vmem:[%s1109] sm:$0xff]
    %v1111 = vld [vmem:[%s1109 + $0x8] sm:$0xff]
    %v1112 = vld [vmem:[%s1109 + $0x10] sm:$0xff]
    %1113 = vmatpush.msra.mxu0 %v301
    %1114 = vmatpush.msra.mxu0 %v298
    %1115 = vmatpush.msra.mxu0 %v295
    %1116 = vmatpush.msra.mxu0 %v292
    %1117 = vmatpush.msra.mxu0 %v289
    %1118 = vmatpush.msra.mxu0 %v286
    %1119 = vmatpush.msra.mxu0 %v283
    %1120 = vmatpush.msra.mxu0 %v280
    %1121 = vmatpush.msra.mxu0 %v277
    %1122 = vmatpush.msra.mxu0 %v274
    %1123 = vmatpush.msra.mxu0 %v271
    %1124 = vmatpush.msra.mxu0 %v268
    %1125 = vmatpush.msra.mxu0 %v265
    %1126 = vmatpush.msra.mxu0 %v262
    %1127 = vmatpush.msra.mxu0 %v259
    %1128 = vmatpush.msra.mxu0 %v256
    %1129 = vmatmul.f32.gmra.mxu0 %v1106
    %v1130 = vpop.f32.mrf.mxu0
    %v1131 = vadd.f32 0.0, %v1130
    %1132 = vdwg.mxu0
    %1133 = vmatpush.msra.mxu0 %v302
    %1134 = vmatpush.msra.mxu0 %v299
    %1135 = vmatpush.msra.mxu0 %v296
    %1136 = vmatpush.msra.mxu0 %v293
    %1137 = vmatpush.msra.mxu0 %v290
    %1138 = vmatpush.msra.mxu0 %v287
    %1139 = vmatpush.msra.mxu0 %v284
    %1140 = vmatpush.msra.mxu0 %v281
    %1141 = vmatpush.msra.mxu0 %v278
    %1142 = vmatpush.msra.mxu0 %v275
    %1143 = vmatpush.msra.mxu0 %v272
    %1144 = vmatpush.msra.mxu0 %v269
    %1145 = vmatpush.msra.mxu0 %v266
    %1146 = vmatpush.msra.mxu0 %v263
    %1147 = vmatpush.msra.mxu0 %v260
    %1148 = vmatpush.msra.mxu0 %v257
    %1149 = vmatmul.f32.gmra.mxu0 %v1106
    %v1150 = vpop.f32.mrf.mxu0
    %v1151 = vadd.f32 0.0, %v1150
    %1152 = vdwg.mxu0
    %1153 = vmatpush.msra.mxu0 %v303
    %1154 = vmatpush.msra.mxu0 %v300
    %1155 = vmatpush.msra.mxu0 %v297
    %1156 = vmatpush.msra.mxu0 %v294
    %1157 = vmatpush.msra.mxu0 %v291
    %1158 = vmatpush.msra.mxu0 %v288
    %1159 = vmatpush.msra.mxu0 %v285
    %1160 = vmatpush.msra.mxu0 %v282
    %1161 = vmatpush.msra.mxu0 %v279
    %1162 = vmatpush.msra.mxu0 %v276
    %1163 = vmatpush.msra.mxu0 %v273
    %1164 = vmatpush.msra.mxu0 %v270
    %1165 = vmatpush.msra.mxu0 %v267
    %1166 = vmatpush.msra.mxu0 %v264
    %1167 = vmatpush.msra.mxu0 %v261
    %1168 = vmatpush.msra.mxu0 %v258
    %1169 = vmatmul.f32.gmra.mxu0 %v1106
    %v1170 = vpop.f32.mrf.mxu0
    %v1171 = vadd.f32 0.0, %v1170
    %1172 = vdwg.mxu0
    %v1173 = vadd.f32 %v1110, %v1131
    %v1174 = vadd.f32 %v1111, %v1151
    %v1175 = vxor.u32 %v1173, 2147483648
    %v1176 = vxor.u32 %v1174, 2147483648
    %v1177 = vmul.f32 %v1175, 1.442695
    %v1178 = vpow.pop %v1177
    %v1179 = vmul.f32 %v1176, 1.442695
    %v1180 = vpow.pop %v1179
    %v1181 = vadd.f32 %v1178, 1.0
    %v1182 = vadd.f32 %v1180, 1.0
    %v1183 = vrcp.pop %v1181
    %v1184 = vmul.f32 %v1181, %v1183
    %v1185 = vsub.f32 1.0, %v1184
    %v1186 = vmul.f32 %v1183, %v1185
    %v1187 = vadd.f32 %v1183, %v1186
    %vm1188 = vweird.f32 %v1181
    %vm1189 = vweird.f32 %v1183
    %vm1190 = vmor %vm1188, %vm1189
    %v1191 = vsel %vm1190, %v1183, %v1187
    %v1192 = vand.u32 2147483647, %v1181
    %vm1193 = vcmp.eq.f32.partialorder %v1192, 8.507059e+37
    %v1194 = vand.u32 %v1181, 2147483648
    %v1195 = vor.u32 1.1754944e-38, %v1194
    %v1196 = vsel %vm1193, %v1195, %v1191
    %v1197 = vmul.f32 1.0, %v1196
    %v1198 = vrcp.pop %v1182
    %v1199 = vmul.f32 %v1182, %v1198
    %v1200 = vsub.f32 1.0, %v1199
    %v1201 = vmul.f32 %v1198, %v1200
    %v1202 = vadd.f32 %v1198, %v1201
    %vm1203 = vweird.f32 %v1182
    %vm1204 = vweird.f32 %v1198
    %vm1205 = vmor %vm1203, %vm1204
    %v1206 = vsel %vm1205, %v1198, %v1202
    %v1207 = vand.u32 2147483647, %v1182
    %vm1208 = vcmp.eq.f32.partialorder %v1207, 8.507059e+37
    %v1209 = vand.u32 %v1182, 2147483648
    %v1210 = vor.u32 1.1754944e-38, %v1209
    %v1211 = vsel %vm1208, %v1210, %v1206
    %v1212 = vmul.f32 1.0, %v1211
    %v1213 = vadd.f32 %v1171, %v306
    %v1214 = vmul.f32 %v1197, %v1213
    %v1215 = vadd.f32 %v1112, %v1214
    %v1216 = vtanh.pop %v1215
    %v1217 = vsub.f32 1.0, %v1212
    %v1218 = vmul.f32 %v1217, %v1216
    %v1219 = vmul.f32 %v1212, %v1106
    %v1220 = vadd.f32 %v1218, %v1219
    %1221 = vst [vmem:[#allocation8] sm:$0xff] %v1220
    // Predicated region
    $region34: #{tpu_custom_call.1} parent=1 // pred_check
      _
    $region35: #{tpu_custom_call.1} parent=1 // pred_check_branch
      %1223 = sbr.rel (0) target = $region37
    $region36: #{tpu_custom_call.1} parent=1 // pred_region
      %1225 = vsyncadd [#allocation5], 0
      %s1227 = sshll.u32 [#allocation8], 4
      %s1228 = int_to_ptr.vmem [resolvable:$true] %s1227
      %s1229 = sshll.u32 %s5, 4
      %s1230 = int_to_ptr.hbm [resolvable:$true] %s1229
      %1232 = dma.vmem_to_hbm [thread:$0]  %s1228, 128, %s1230, [#allocation5]
    $region37: #{tpu_custom_call.1} parent=1 // pred_fallthru
      _
    // Predicated region
    $region38: #{tpu_custom_call.1} parent=1 // pred_check
      _
    $region39: #{tpu_custom_call.1} parent=1 // pred_check_branch
      %1234 = sbr.rel (0) target = $region41
    $region40: #{tpu_custom_call.1} parent=1 // pred_region
      %1236 = dma.done [#allocation5], 128
    $region41: #{tpu_custom_call.1} parent=1 // pred_fallthru
      _
    %1237 = vsyncpa [#allocation4], 1
    %1238 = vsyncpa [#allocation7], 1
    %1239 = vsyncpa [#allocation5], 1

</llo_original>
